<compile_context>
chip_gen: v7x
topology: tpu7x:2x2x1
jax: 0.10.0
libtpu: 0.0.40
codegen_flags: <defaults>
</compile_context>

<pallas_src>
import functools

import jax
import jax.numpy as jnp
import numpy as np
from jax.experimental import pallas as pl
from jax.experimental.pallas import tpu as pltpu


# ---------------------------------------------------------------------------
# Pallas kernel: one (batch, row-block) tile per grid step.
#   main_ref : (TH, S, Cp)  bf16  stored rows [j*TH, j*TH+TH) of the padded img
#   tail_ref : (2,  S, Cp)  bf16  stored rows [j*TH+TH, j*TH+TH+2) (halo)
#   o_ref    : (TH, S, Cp)  bf16  output rows (cols [0, W) valid, rest garbage)
# ---------------------------------------------------------------------------
def dyhead_kernel(main_ref, tail_ref, att_ref, dw_ref, spb_ref,
                  fwsp_ref, fwch_ref, fb_ref, tw_ref, tb_ref, o_ref):
    th, s, cp = main_ref.shape
    rrows = th * s                       # output rows (padded width) per block
    prows = (th + 2) * s                 # rows of the full halo window

    # Assemble the contiguous f32 window slab once (one aligned copy + upcast);
    # 8 trailing zero rows give the dx=2 shifted view its upper bound.
    slab = jnp.concatenate(
        [main_ref[...].reshape(rrows, cp).astype(jnp.float32),
         tail_ref[...].reshape(2 * s, cp).astype(jnp.float32),
         jnp.zeros((8, cp), jnp.float32)], axis=0)

    # Column-shifted views (dx = 0, 1, 2).  dx=0 is the slab itself; dx=1,2 are
    # the only two misaligned (relayout) copies left in the kernel.
    cols = (slab, slab[1:1 + prows], slab[2:2 + prows])

    # --- spatial branch: depthwise 3x3 (BN scale folded into dw) + bias + ReLU
    # All dy slices are at multiples of S (S % 8 == 0) => layout preserving.
    dw = dw_ref[...]                                   # (9, Cp) f32
    acc = jnp.zeros((rrows, cp), jnp.float32)
    for dy in range(3):
        off = dy * s
        for dx in range(3):
            k = 3 * dy + dx
            acc = acc + cols[dx][off:off + rrows] * dw[k:k + 1]
    spatial = jnp.maximum(acc + spb_ref[...], 0.0)     # (rrows, Cp) f32

    # --- channel branch: original rows (centre tap dy=1, dx=1) * att vector --
    x_in = cols[1][s:s + rrows]                        # aligned slice, f32
    ch = x_in * att_ref[...]                           # (rrows, Cp) f32

    # --- fusion 1x1 over concat([spatial, channel]) (weights split, BN folded)
    #     -> bias -> ReLU.  bf16 MXU operands, f32 accumulate.
    fused = (jnp.dot(spatial.astype(jnp.bfloat16), fwsp_ref[...],
                     preferred_element_type=jnp.float32)
             + jnp.dot(ch.astype(jnp.bfloat16), fwch_ref[...],
                       preferred_element_type=jnp.float32))
    fused = jnp.maximum(fused + fb_ref[...], 0.0)

    # --- task 1x1 conv (BN folded) + ReLU, then residual ---------------------
    out = jnp.dot(fused.astype(jnp.bfloat16), tw_ref[...],
                  preferred_element_type=jnp.float32)
    out = jnp.maximum(out + tb_ref[...], 0.0) + x_in
    o_ref[...] = out.reshape(th, s, cp).astype(o_ref.dtype)


# ---------------------------------------------------------------------------
# Helpers
# ---------------------------------------------------------------------------
def _round_up(v, m):
    return (v + m - 1) // m * m


def _vmem_capacity():
    try:
        return int(pltpu.get_tpu_info().vmem_capacity_bytes)
    except Exception:
        return 64 * 2 ** 20            # v7x per-core VMEM; most conservative


def _step_vmem_bytes(th, s, cp):
    """Generous per-grid-step VMEM footprint estimate."""
    rrows = th * s
    prows = (th + 2) * s
    io = 2 * (rrows + 2 * s) * cp * 2 + 2 * rrows * cp * 2   # bf16 in/out, x2 buffers
    weights = 2 * (3 * cp * cp * 2 + 16 * cp * 4)            # resident, x2 buffers
    live = (3 * prows + 8 * rrows) * cp * 4                  # f32 slab/shift/intermediates
    return io + weights + live


def _pick_row_block(h, s, cp, vmem_budget, target_rows=2048):
    """Largest even row block whose footprint fits; aims for a matmul M dim
    (TH*S) of >= target_rows so the MXU is not underfilled."""
    h_even = _round_up(max(h, 2), 2)
    best = 2
    for th in range(2, h_even + 1, 2):
        if _step_vmem_bytes(th, s, cp) > vmem_budget:
            break
        best = th
        if th * s >= target_rows:
            break
    return best


def _fold_bn(bn, conv_bias, eps=1e-5):
    gamma, beta, mean, var = bn
    scale = gamma / jnp.sqrt(var + eps)
    bias = scale * (conv_bias - mean) + beta
    return scale, bias


# ---------------------------------------------------------------------------
# Wrapper: NCHW in/out, raw (unfolded) params in.
# ---------------------------------------------------------------------------
def dyhead_forward(x_nchw, params, row_block=None):
    p = params
    n, c, h, w = x_nchw.shape
    cp = _round_up(c, 128)               # lane-dense channel count
    s = _round_up(w + 2, 8)              # sublane-aligned stored row stride

    cap = _vmem_capacity()
    th = int(row_block) if row_block else _pick_row_block(h, s, cp, int(0.7 * cap))
    assert th >= 2 and th % 2 == 0, "row block must be even"
    hp = _round_up(h, th)
    r = hp // th

    # NHWC + halo/lane padding + bf16 cast; fuses into one XLA pass.
    x = jnp.transpose(x_nchw, (0, 2, 3, 1))                        # (N, H, W, C)
    xq = jnp.pad(x.astype(jnp.bfloat16),
                 ((0, 0), (1, hp + 1 - h), (1, s - 1 - w), (0, cp - c)))

    # --- channel attention: per-image (1, Cp) vector, trivial cost in XLA ----
    gap = jnp.mean(x.astype(jnp.float32), axis=(1, 2))             # (N, C)
    hid = jnp.maximum(gap @ p['ca_w1'] + p['ca_b1'], 0.0)
    att = jax.nn.sigmoid(hid @ p['ca_w2'] + p['ca_b2'])            # (N, C)
    att = jnp.pad(att, ((0, 0), (0, cp - c))).reshape(n, 1, cp).astype(jnp.float32)

    # --- fold inference BN into weights/biases, pad channels, bf16 weights ---
    def pad_vec(v):                                   # (C,) -> (1, Cp) f32
        return jnp.pad(v.reshape(1, c), ((0, 0), (0, cp - c))).astype(jnp.float32)

    def pad_mat(m):                                   # (C, C) -> (Cp, Cp) bf16
        return jnp.pad(m, ((0, cp - c), (0, cp - c))).astype(jnp.bfloat16)

    s_sp, b_sp = _fold_bn(p['bn_sp'], p['dw_b'])
    dw = jnp.pad((p['dw_w'] * s_sp).reshape(9, c),
                 ((0, 0), (0, cp - c))).astype(jnp.float32)
    spb = pad_vec(b_sp)

    s_f, b_f = _fold_bn(p['bn_f'], p['fu_b'])
    fu = p['fu_w'] * s_f[None, :]                     # (2C, C), scale folded
    fwsp, fwch, fb = pad_mat(fu[:c]), pad_mat(fu[c:]), pad_vec(b_f)

    s_t, b_t = _fold_bn(p['bn_t'], p['tk_b'])
    tw, tb = pad_mat(p['tk_w'] * s_t[None, :]), pad_vec(b_t)

    # --- generation-aware VMEM limit ----------------------------------------
    est = _step_vmem_bytes(th, s, cp)
    vmem_limit = int(min(max(2 * est, 32 * 2 ** 20), int(0.85 * cap)))

    th_half = th // 2
    in_specs = [
        # main TH stored rows of the padded image (non-overlapping blocks)
        pl.BlockSpec((None, th, s, cp), lambda i, j: (i, j, 0, 0)),
        # 2-row bottom halo (disjoint 2-row blocks; TH even => block index ok)
        pl.BlockSpec((None, 2, s, cp), lambda i, j: (i, (j + 1) * th_half, 0, 0)),
        pl.BlockSpec((None, 1, cp), lambda i, j: (i, 0, 0)),       # att
        pl.BlockSpec((9, cp), lambda i, j: (0, 0)),                # dw
        pl.BlockSpec((1, cp), lambda i, j: (0, 0)),                # spb
        pl.BlockSpec((cp, cp), lambda i, j: (0, 0)),               # fwsp
        pl.BlockSpec((cp, cp), lambda i, j: (0, 0)),               # fwch
        pl.BlockSpec((1, cp), lambda i, j: (0, 0)),                # fb
        pl.BlockSpec((cp, cp), lambda i, j: (0, 0)),               # tw
        pl.BlockSpec((1, cp), lambda i, j: (0, 0)),                # tb
    ]
    out_specs = pl.BlockSpec((None, th, s, cp), lambda i, j: (i, j, 0, 0))

    out = pl.pallas_call(
        dyhead_kernel,
        out_shape=jax.ShapeDtypeStruct((n, hp, s, cp), jnp.bfloat16),
        grid_spec=pltpu.PrefetchScalarGridSpec(
            num_scalar_prefetch=0,
            grid=(n, r),
            in_specs=in_specs,
            out_specs=out_specs),
        compiler_params=pltpu.CompilerParams(
            dimension_semantics=("parallel", "parallel"),
            vmem_limit_bytes=vmem_limit),
    )(xq, xq, att, dw, spb, fwsp, fwch, fb, tw, tb)

    out = out[:, :h, :w, :c]                          # trim pad rows/cols/chans
    return jnp.transpose(out, (0, 3, 1, 2)).astype(x_nchw.dtype)


# ---------------------------------------------------------------------------
# Deterministic raw parameters (mimicking the PyTorch module in eval mode)
# ---------------------------------------------------------------------------
def init_params(key, c, dtype=jnp.float32):
    cr = max(c // 4, 1)
    ks = iter(jax.random.split(key, 24))

    def rnd(shape, scale=0.1):
        return (scale * jax.random.normal(next(ks), shape)).astype(dtype)

    def bn_params():
        gamma = (1.0 + 0.1 * jax.random.normal(next(ks), (c,))).astype(dtype)
        beta = rnd((c,))
        mean = rnd((c,))
        var = (1.0 + 0.1 * jnp.abs(jax.random.normal(next(ks), (c,)))).astype(dtype)
        return (gamma, beta, mean, var)

    return dict(
        dw_w=rnd((3, 3, c)), dw_b=rnd((c,)), bn_sp=bn_params(),
        ca_w1=rnd((c, cr)), ca_b1=rnd((cr,)),
        ca_w2=rnd((cr, c)), ca_b2=rnd((c,)),
        fu_w=rnd((2 * c, c)), fu_b=rnd((c,)), bn_f=bn_params(),
        tk_w=rnd((c, c)), tk_b=rnd((c,)), bn_t=bn_params(),
    )


# ---------------------------------------------------------------------------
# Pure-JAX reference (explicit eval-mode BN; matches the PyTorch forward)
# ---------------------------------------------------------------------------
def dyhead_ref(x_nchw, p, eps=1e-5):
    def bn(z, gamma, beta, mean, var):
        return (z - mean) / jnp.sqrt(var + eps) * gamma + beta

    x = jnp.transpose(x_nchw, (0, 2, 3, 1)).astype(jnp.float32)     # NHWC
    n, h, w, c = x.shape

    xpad = jnp.pad(x, ((0, 0), (1, 1), (1, 1), (0, 0)))
    acc = jnp.zeros_like(x)
    for dy in range(3):
        for dx in range(3):
            acc = acc + xpad[:, dy:dy + h, dx:dx + w, :] * p['dw_w'][dy, dx]
    spatial = jax.nn.relu(bn(acc + p['dw_b'], *p['bn_sp']))

    gap = jnp.mean(x, axis=(1, 2))
    hid = jax.nn.relu(gap @ p['ca_w1'] + p['ca_b1'])
    att = jax.nn.sigmoid(hid @ p['ca_w2'] + p['ca_b2'])
    ch = x * att[:, None, None, :]

    cat = jnp.concatenate([spatial, ch], axis=-1)
    fused = jax.nn.relu(bn(jnp.einsum('nhwk,kc->nhwc', cat, p['fu_w'])
                           + p['fu_b'], *p['bn_f']))
    out = jax.nn.relu(bn(jnp.einsum('nhwc,cd->nhwd', fused, p['tk_w'])
                         + p['tk_b'], *p['bn_t']))
    return jnp.transpose(out + x, (0, 3, 1, 2))


if __name__ == "__main__":
    key = jax.random.PRNGKey(0)
    kx, kp = jax.random.split(key)
    N, C, H, W = 2, 4, 16, 16
    x = jax.random.normal(kx, (N, C, H, W), jnp.float32)
    params = init_params(kp, C)

    # row_block=8 -> 2 row blocks per image: exercises the main/tail halo path.
    fwd = jax.jit(functools.partial(dyhead_forward, row_block=8))
    out = jax.block_until_ready(fwd(x, params))

    ref = dyhead_ref(x, params)
    assert out.shape == (N, C, H, W)
    # Tolerance absorbs bf16 activations in HBM + bf16 MXU operands (f32 acc).
    np.testing.assert_allclose(np.asarray(out), np.asarray(ref),
                               rtol=2e-2, atol=2e-2)
    print("KERNEL_OK")
</pallas_src>

<mosaic_0001>
module attributes {stable_mosaic.version = 11 : i64} {
  func.func @dyhead_kernel(%arg0: i32, %arg1: i32, %arg2: memref<1x8x24x128xbf16, #tpu.memory_space<vmem>>, %arg3: memref<1x2x24x128xbf16, #tpu.memory_space<vmem>>, %arg4: memref<1x1x128xf32, #tpu.memory_space<vmem>>, %arg5: memref<9x128xf32, #tpu.memory_space<vmem>>, %arg6: memref<1x128xf32, #tpu.memory_space<vmem>>, %arg7: memref<128x128xbf16, #tpu.memory_space<vmem>>, %arg8: memref<128x128xbf16, #tpu.memory_space<vmem>>, %arg9: memref<1x128xf32, #tpu.memory_space<vmem>>, %arg10: memref<128x128xbf16, #tpu.memory_space<vmem>>, %arg11: memref<1x128xf32, #tpu.memory_space<vmem>>, %arg12: memref<1x8x24x128xbf16, #tpu.memory_space<vmem>>) attributes {dimension_semantics = [#tpu.dimension_semantics<parallel>, #tpu.dimension_semantics<parallel>], iteration_bounds = array<i64: 2, 2>, scalar_prefetch = 0 : i64, scratch_operands = 0 : i64, tpu.core_type = #tpu.core_type<tc>, window_params = [{transform_indices = @transform_0, window_bounds = array<i64: 1, 8, 24, 128>}, {transform_indices = @transform_1, window_bounds = array<i64: 1, 2, 24, 128>}, {transform_indices = @transform_2, window_bounds = array<i64: 1, 1, 128>}, {pipeline_mode = #tpu.pipeline_mode<synchronous>, transform_indices = @transform_3, window_bounds = array<i64: 9, 128>}, {pipeline_mode = #tpu.pipeline_mode<synchronous>, transform_indices = @transform_4, window_bounds = array<i64: 1, 128>}, {pipeline_mode = #tpu.pipeline_mode<synchronous>, transform_indices = @transform_5, window_bounds = array<i64: 128, 128>}, {pipeline_mode = #tpu.pipeline_mode<synchronous>, transform_indices = @transform_6, window_bounds = array<i64: 128, 128>}, {pipeline_mode = #tpu.pipeline_mode<synchronous>, transform_indices = @transform_7, window_bounds = array<i64: 1, 128>}, {pipeline_mode = #tpu.pipeline_mode<synchronous>, transform_indices = @transform_8, window_bounds = array<i64: 128, 128>}, {pipeline_mode = #tpu.pipeline_mode<synchronous>, transform_indices = @transform_9, window_bounds = array<i64: 1, 128>}, {transform_indices = @transform_10, window_bounds = array<i64: 1, 8, 24, 128>}]} {
    %c0 = arith.constant 0 : index
    %c0_0 = arith.constant 0 : index
    %c0_1 = arith.constant 0 : index
    %c0_2 = arith.constant 0 : index
    %0 = vector.load %arg2[%c0, %c0_0, %c0_1, %c0_2] : memref<1x8x24x128xbf16, #tpu.memory_space<vmem>>, vector<1x8x24x128xbf16>
    %1 = vector.shape_cast %0 : vector<1x8x24x128xbf16> to vector<8x24x128xbf16>
    %2 = vector.shape_cast %1 : vector<8x24x128xbf16> to vector<192x128xbf16>
    %3 = arith.extf %2 : vector<192x128xbf16> to vector<192x128xf32>
    %c0_3 = arith.constant 0 : index
    %c0_4 = arith.constant 0 : index
    %c0_5 = arith.constant 0 : index
    %c0_6 = arith.constant 0 : index
    %4 = vector.load %arg3[%c0_3, %c0_4, %c0_5, %c0_6] : memref<1x2x24x128xbf16, #tpu.memory_space<vmem>>, vector<1x2x24x128xbf16>
    %5 = vector.shape_cast %4 : vector<1x2x24x128xbf16> to vector<2x24x128xbf16>
    %6 = vector.shape_cast %5 : vector<2x24x128xbf16> to vector<48x128xbf16>
    %7 = arith.extf %6 : vector<48x128xbf16> to vector<48x128xf32>
    %cst = arith.constant 0.000000e+00 : f32
    %8 = vector.broadcast %cst : f32 to vector<8x128xf32>
    %9 = tpu.concatenate %3, %7, %8 in 0 : vector<192x128xf32>, vector<48x128xf32>, vector<8x128xf32> -> vector<248x128xf32>
    %10 = vector.extract_strided_slice %9 {offsets = [1, 0], sizes = [240, 128], strides = [1, 1]} : vector<248x128xf32> to vector<240x128xf32>
    %11 = vector.extract_strided_slice %9 {offsets = [2, 0], sizes = [240, 128], strides = [1, 1]} : vector<248x128xf32> to vector<240x128xf32>
    %c0_7 = arith.constant 0 : index
    %c0_8 = arith.constant 0 : index
    %12 = vector.load %arg5[%c0_7, %c0_8] : memref<9x128xf32, #tpu.memory_space<vmem>>, vector<9x128xf32>
    %cst_9 = arith.constant 0.000000e+00 : f32
    %13 = vector.broadcast %cst_9 : f32 to vector<192x128xf32>
    %14 = vector.extract_strided_slice %9 {offsets = [0, 0], sizes = [192, 128], strides = [1, 1]} : vector<248x128xf32> to vector<192x128xf32>
    %15 = vector.extract_strided_slice %12 {offsets = [0, 0], sizes = [1, 128], strides = [1, 1]} : vector<9x128xf32> to vector<1x128xf32>
    %16 = vector.broadcast %15 : vector<1x128xf32> to vector<192x128xf32>
    %17 = arith.mulf %14, %16 : vector<192x128xf32>
    %18 = arith.addf %13, %17 : vector<192x128xf32>
    %19 = vector.extract_strided_slice %10 {offsets = [0, 0], sizes = [192, 128], strides = [1, 1]} : vector<240x128xf32> to vector<192x128xf32>
    %20 = vector.extract_strided_slice %12 {offsets = [1, 0], sizes = [1, 128], strides = [1, 1]} : vector<9x128xf32> to vector<1x128xf32>
    %21 = vector.broadcast %20 : vector<1x128xf32> to vector<192x128xf32>
    %22 = arith.mulf %19, %21 : vector<192x128xf32>
    %23 = arith.addf %18, %22 : vector<192x128xf32>
    %24 = vector.extract_strided_slice %11 {offsets = [0, 0], sizes = [192, 128], strides = [1, 1]} : vector<240x128xf32> to vector<192x128xf32>
    %25 = vector.extract_strided_slice %12 {offsets = [2, 0], sizes = [1, 128], strides = [1, 1]} : vector<9x128xf32> to vector<1x128xf32>
    %26 = vector.broadcast %25 : vector<1x128xf32> to vector<192x128xf32>
    %27 = arith.mulf %24, %26 : vector<192x128xf32>
    %28 = arith.addf %23, %27 : vector<192x128xf32>
    %29 = vector.extract_strided_slice %9 {offsets = [24, 0], sizes = [192, 128], strides = [1, 1]} : vector<248x128xf32> to vector<192x128xf32>
    %30 = vector.extract_strided_slice %12 {offsets = [3, 0], sizes = [1, 128], strides = [1, 1]} : vector<9x128xf32> to vector<1x128xf32>
    %31 = vector.broadcast %30 : vector<1x128xf32> to vector<192x128xf32>
    %32 = arith.mulf %29, %31 : vector<192x128xf32>
    %33 = arith.addf %28, %32 : vector<192x128xf32>
    %34 = vector.extract_strided_slice %10 {offsets = [24, 0], sizes = [192, 128], strides = [1, 1]} : vector<240x128xf32> to vector<192x128xf32>
    %35 = vector.extract_strided_slice %12 {offsets = [4, 0], sizes = [1, 128], strides = [1, 1]} : vector<9x128xf32> to vector<1x128xf32>
    %36 = vector.broadcast %35 : vector<1x128xf32> to vector<192x128xf32>
    %37 = arith.mulf %34, %36 : vector<192x128xf32>
    %38 = arith.addf %33, %37 : vector<192x128xf32>
    %39 = vector.extract_strided_slice %11 {offsets = [24, 0], sizes = [192, 128], strides = [1, 1]} : vector<240x128xf32> to vector<192x128xf32>
    %40 = vector.extract_strided_slice %12 {offsets = [5, 0], sizes = [1, 128], strides = [1, 1]} : vector<9x128xf32> to vector<1x128xf32>
    %41 = vector.broadcast %40 : vector<1x128xf32> to vector<192x128xf32>
    %42 = arith.mulf %39, %41 : vector<192x128xf32>
    %43 = arith.addf %38, %42 : vector<192x128xf32>
    %44 = vector.extract_strided_slice %9 {offsets = [48, 0], sizes = [192, 128], strides = [1, 1]} : vector<248x128xf32> to vector<192x128xf32>
    %45 = vector.extract_strided_slice %12 {offsets = [6, 0], sizes = [1, 128], strides = [1, 1]} : vector<9x128xf32> to vector<1x128xf32>
    %46 = vector.broadcast %45 : vector<1x128xf32> to vector<192x128xf32>
    %47 = arith.mulf %44, %46 : vector<192x128xf32>
    %48 = arith.addf %43, %47 : vector<192x128xf32>
    %49 = vector.extract_strided_slice %10 {offsets = [48, 0], sizes = [192, 128], strides = [1, 1]} : vector<240x128xf32> to vector<192x128xf32>
    %50 = vector.extract_strided_slice %12 {offsets = [7, 0], sizes = [1, 128], strides = [1, 1]} : vector<9x128xf32> to vector<1x128xf32>
    %51 = vector.broadcast %50 : vector<1x128xf32> to vector<192x128xf32>
    %52 = arith.mulf %49, %51 : vector<192x128xf32>
    %53 = arith.addf %48, %52 : vector<192x128xf32>
    %54 = vector.extract_strided_slice %11 {offsets = [48, 0], sizes = [192, 128], strides = [1, 1]} : vector<240x128xf32> to vector<192x128xf32>
    %55 = vector.extract_strided_slice %12 {offsets = [8, 0], sizes = [1, 128], strides = [1, 1]} : vector<9x128xf32> to vector<1x128xf32>
    %56 = vector.broadcast %55 : vector<1x128xf32> to vector<192x128xf32>
    %57 = arith.mulf %54, %56 : vector<192x128xf32>
    %58 = arith.addf %53, %57 : vector<192x128xf32>
    %c0_10 = arith.constant 0 : index
    %c0_11 = arith.constant 0 : index
    %59 = vector.load %arg6[%c0_10, %c0_11] : memref<1x128xf32, #tpu.memory_space<vmem>>, vector<1x128xf32>
    %60 = vector.broadcast %59 : vector<1x128xf32> to vector<192x128xf32>
    %61 = arith.addf %58, %60 : vector<192x128xf32>
    %cst_12 = arith.constant 0.000000e+00 : f32
    %62 = vector.broadcast %cst_12 : f32 to vector<192x128xf32>
    %63 = arith.maximumf %61, %62 : vector<192x128xf32>
    %64 = vector.extract_strided_slice %10 {offsets = [24, 0], sizes = [192, 128], strides = [1, 1]} : vector<240x128xf32> to vector<192x128xf32>
    %c0_13 = arith.constant 0 : index
    %c0_14 = arith.constant 0 : index
    %c0_15 = arith.constant 0 : index
    %65 = vector.load %arg4[%c0_13, %c0_14, %c0_15] : memref<1x1x128xf32, #tpu.memory_space<vmem>>, vector<1x1x128xf32>
    %66 = vector.shape_cast %65 : vector<1x1x128xf32> to vector<1x128xf32>
    %67 = vector.broadcast %66 : vector<1x128xf32> to vector<192x128xf32>
    %68 = arith.mulf %64, %67 : vector<192x128xf32>
    %69 = arith.truncf %63 : vector<192x128xf32> to vector<192x128xbf16>
    %c0_16 = arith.constant 0 : index
    %c0_17 = arith.constant 0 : index
    %70 = vector.load %arg7[%c0_16, %c0_17] : memref<128x128xbf16, #tpu.memory_space<vmem>>, vector<128x128xbf16>
    %cst_18 = arith.constant dense<0.000000e+00> : vector<192x128xf32>
    %71 = tpu.matmul %69, %70, %cst_18 {dimension_numbers = #tpu.dot_dimension_numbers<[1], [0], [0], [1], [0, 0, 1, 1], [], []>} : vector<192x128xbf16>, vector<128x128xbf16>, vector<192x128xf32> -> vector<192x128xf32>
    %72 = arith.truncf %68 : vector<192x128xf32> to vector<192x128xbf16>
    %c0_19 = arith.constant 0 : index
    %c0_20 = arith.constant 0 : index
    %73 = vector.load %arg8[%c0_19, %c0_20] : memref<128x128xbf16, #tpu.memory_space<vmem>>, vector<128x128xbf16>
    %cst_21 = arith.constant dense<0.000000e+00> : vector<192x128xf32>
    %74 = tpu.matmul %72, %73, %cst_21 {dimension_numbers = #tpu.dot_dimension_numbers<[1], [0], [0], [1], [0, 0, 1, 1], [], []>} : vector<192x128xbf16>, vector<128x128xbf16>, vector<192x128xf32> -> vector<192x128xf32>
    %75 = arith.addf %71, %74 : vector<192x128xf32>
    %c0_22 = arith.constant 0 : index
    %c0_23 = arith.constant 0 : index
    %76 = vector.load %arg9[%c0_22, %c0_23] : memref<1x128xf32, #tpu.memory_space<vmem>>, vector<1x128xf32>
    %77 = vector.broadcast %76 : vector<1x128xf32> to vector<192x128xf32>
    %78 = arith.addf %75, %77 : vector<192x128xf32>
    %cst_24 = arith.constant 0.000000e+00 : f32
    %79 = vector.broadcast %cst_24 : f32 to vector<192x128xf32>
    %80 = arith.maximumf %78, %79 : vector<192x128xf32>
    %81 = arith.truncf %80 : vector<192x128xf32> to vector<192x128xbf16>
    %c0_25 = arith.constant 0 : index
    %c0_26 = arith.constant 0 : index
    %82 = vector.load %arg10[%c0_25, %c0_26] : memref<128x128xbf16, #tpu.memory_space<vmem>>, vector<128x128xbf16>
    %cst_27 = arith.constant dense<0.000000e+00> : vector<192x128xf32>
    %83 = tpu.matmul %81, %82, %cst_27 {dimension_numbers = #tpu.dot_dimension_numbers<[1], [0], [0], [1], [0, 0, 1, 1], [], []>} : vector<192x128xbf16>, vector<128x128xbf16>, vector<192x128xf32> -> vector<192x128xf32>
    %c0_28 = arith.constant 0 : index
    %c0_29 = arith.constant 0 : index
    %84 = vector.load %arg11[%c0_28, %c0_29] : memref<1x128xf32, #tpu.memory_space<vmem>>, vector<1x128xf32>
    %85 = vector.broadcast %84 : vector<1x128xf32> to vector<192x128xf32>
    %86 = arith.addf %83, %85 : vector<192x128xf32>
    %cst_30 = arith.constant 0.000000e+00 : f32
    %87 = vector.broadcast %cst_30 : f32 to vector<192x128xf32>
    %88 = arith.maximumf %86, %87 : vector<192x128xf32>
    %89 = arith.addf %88, %64 : vector<192x128xf32>
    %90 = vector.shape_cast %89 : vector<192x128xf32> to vector<8x24x128xf32>
    %91 = arith.truncf %90 : vector<8x24x128xf32> to vector<8x24x128xbf16>
    %c0_31 = arith.constant 0 : index
    %c0_32 = arith.constant 0 : index
    %c0_33 = arith.constant 0 : index
    %c0_34 = arith.constant 0 : index
    %92 = vector.load %arg12[%c0_31, %c0_32, %c0_33, %c0_34] : memref<1x8x24x128xbf16, #tpu.memory_space<vmem>>, vector<1x8x24x128xbf16>
    %93 = vector.shape_cast %92 : vector<1x8x24x128xbf16> to vector<8x24x128xbf16>
    %94 = vector.shape_cast %91 : vector<8x24x128xbf16> to vector<1x8x24x128xbf16>
    tpu.vector_store %arg12[%c0_31, %c0_32, %c0_33, %c0_34], %94 {strides = array<i32>} : memref<1x8x24x128xbf16, #tpu.memory_space<vmem>>, vector<1x8x24x128xbf16>,
    return
  }
  func.func @transform_0(%arg0: i32, %arg1: i32) -> (i32, i32, i32, i32) {
    %c0_i32 = arith.constant 0 : i32
    %c0_i32_0 = arith.constant 0 : i32
    %c0_i32_1 = arith.constant 0 : i32
    return %arg0, %arg1, %c0_i32, %c0_i32_0 : i32, i32, i32, i32
  }
  func.func @transform_1(%arg0: i32, %arg1: i32) -> (i32, i32, i32, i32) {
    %c1_i32 = arith.constant 1 : i32
    %0 = arith.addi %arg1, %c1_i32 : i32
    %c4_i32 = arith.constant 4 : i32
    %1 = arith.muli %0, %c4_i32 : i32
    %c0_i32 = arith.constant 0 : i32
    %c0_i32_0 = arith.constant 0 : i32
    %c0_i32_1 = arith.constant 0 : i32
    return %arg0, %1, %c0_i32, %c0_i32_0 : i32, i32, i32, i32
  }
  func.func @transform_2(%arg0: i32, %arg1: i32) -> (i32, i32, i32) {
    %c0_i32 = arith.constant 0 : i32
    %c0_i32_0 = arith.constant 0 : i32
    %c0_i32_1 = arith.constant 0 : i32
    return %arg0, %c0_i32, %c0_i32_0 : i32, i32, i32
  }
  func.func @transform_3(%arg0: i32, %arg1: i32) -> (i32, i32) {
    %c0_i32 = arith.constant 0 : i32
    %c0_i32_0 = arith.constant 0 : i32
    %c0_i32_1 = arith.constant 0 : i32
    return %c0_i32, %c0_i32_0 : i32, i32
  }
  func.func @transform_4(%arg0: i32, %arg1: i32) -> (i32, i32) {
    %c0_i32 = arith.constant 0 : i32
    %c0_i32_0 = arith.constant 0 : i32
    %c0_i32_1 = arith.constant 0 : i32
    return %c0_i32, %c0_i32_0 : i32, i32
  }
  func.func @transform_5(%arg0: i32, %arg1: i32) -> (i32, i32) {
    %c0_i32 = arith.constant 0 : i32
    %c0_i32_0 = arith.constant 0 : i32
    %c0_i32_1 = arith.constant 0 : i32
    return %c0_i32, %c0_i32_0 : i32, i32
  }
  func.func @transform_6(%arg0: i32, %arg1: i32) -> (i32, i32) {
    %c0_i32 = arith.constant 0 : i32
    %c0_i32_0 = arith.constant 0 : i32
    %c0_i32_1 = arith.constant 0 : i32
    return %c0_i32, %c0_i32_0 : i32, i32
  }
  func.func @transform_7(%arg0: i32, %arg1: i32) -> (i32, i32) {
    %c0_i32 = arith.constant 0 : i32
    %c0_i32_0 = arith.constant 0 : i32
    %c0_i32_1 = arith.constant 0 : i32
    return %c0_i32, %c0_i32_0 : i32, i32
  }
  func.func @transform_8(%arg0: i32, %arg1: i32) -> (i32, i32) {
    %c0_i32 = arith.constant 0 : i32
    %c0_i32_0 = arith.constant 0 : i32
    %c0_i32_1 = arith.constant 0 : i32
    return %c0_i32, %c0_i32_0 : i32, i32
  }
  func.func @transform_9(%arg0: i32, %arg1: i32) -> (i32, i32) {
    %c0_i32 = arith.constant 0 : i32
    %c0_i32_0 = arith.constant 0 : i32
    %c0_i32_1 = arith.constant 0 : i32
    return %c0_i32, %c0_i32_0 : i32, i32
  }
  func.func @transform_10(%arg0: i32, %arg1: i32) -> (i32, i32, i32, i32) {
    %c0_i32 = arith.constant 0 : i32
    %c0_i32_0 = arith.constant 0 : i32
    %c0_i32_1 = arith.constant 0 : i32
    return %arg0, %arg1, %c0_i32, %c0_i32_0 : i32, i32, i32, i32
  }
}

</mosaic_0001>

<llo_original>
// kernel: dyhead_forward.1
$region0: #{dyhead_forward.1}
  #allocation0 [shape = 'u32[]', space=smem, size = 0x4, offset = 0x4, fixed_abs, tag = 'smem constant byte address 0x4 - core index']
  #allocation1 [shape = 'u32[144,128]{1,0:T(1,128)}', space=vmem, size = 0x12000, scoped, tag = 'internal scratch']
  %s0 = inlined_call_operand.vmem [shape: bf16[2,18,24,128], index: 0, kind: input, shape index: {}, may-alias: {0,1}]
  %s1 = inlined_call_operand.vmem [shape: bf16[2,18,24,128], index: 1, kind: input, shape index: {}, may-alias: {0,1}]
  %s2 = inlined_call_operand.vmem [shape: f32[2,1,128], index: 2, kind: input, shape index: {}]
  %s3 = inlined_call_operand.vmem [shape: f32[9,128], index: 3, kind: input, shape index: {}]
  %s4 = inlined_call_operand.vmem [shape: f32[1,128], index: 4, kind: input, shape index: {}]
  %s5 = inlined_call_operand.vmem [shape: bf16[128,128], index: 5, kind: input, shape index: {}]
  %s6 = inlined_call_operand.vmem [shape: bf16[128,128], index: 6, kind: input, shape index: {}]
  %s7 = inlined_call_operand.vmem [shape: f32[1,128], index: 7, kind: input, shape index: {}]
  %s8 = inlined_call_operand.vmem [shape: bf16[128,128], index: 8, kind: input, shape index: {}]
  %s9 = inlined_call_operand.vmem [shape: f32[1,128], index: 9, kind: input, shape index: {}]
  %s10 = inlined_call_operand.vmem [shape: bf16[2,16,24,128], index: 10, kind: output, shape index: {}]
  %s11 = sld [smem:[#allocation0]]
  $region73: #{dyhead_forward.1} parent=0
    _
  %s13 = ssub.s32 1, %s11
  %s14 = scalar_select 0, %s13, %s11
  loop: start=0, step=1, limit=6
  $region2: #{dyhead_forward.1} parent=0 // loop_pre_header
    _
  $region3: #{dyhead_forward.1} parent=0 // loop_header
    %s16 = sphi 0, %s20
    %p17 = scmp.ge.s32.totalorder %s16, 6
    %s23 = sphi 0, %s35
    %s24 = sphi 0, %s31
    %s25 = sphi 0, %s23
    %s26 = sphi 0, %s24
    %s27 = sphi 0, %s25
    %s28 = sphi 0, %s26
    %s40 = sphi 0, %s42
    %s43 = sphi 0, %s40
    %s44 = sphi 0, %s43
    %s60 = sphi 0, %s44
    %s72 = sphi 0, %s74
    %s75 = sphi 0, %s72
    %s76 = sphi 0, %s75
    %s92 = sphi 0, %s76
    %s98 = sphi 0, %s100
    %s101 = sphi 0, %s98
    %s102 = sphi 0, %s101
    %s118 = sphi 0, %s102
    %s122 = sphi 0, %s122
    %s124 = sphi 0, %s122
    %s125 = sphi 0, %s124
    %s139 = sphi 0, %s125
    %s143 = sphi 0, %s143
    %s145 = sphi 0, %s143
    %s146 = sphi 0, %s145
    %s160 = sphi 0, %s146
    %s164 = sphi 0, %s164
    %s166 = sphi 0, %s164
    %s167 = sphi 0, %s166
    %s181 = sphi 0, %s167
    %s185 = sphi 0, %s185
    %s187 = sphi 0, %s185
    %s188 = sphi 0, %s187
    %s202 = sphi 0, %s188
    %s206 = sphi 0, %s206
    %s208 = sphi 0, %s206
    %s209 = sphi 0, %s208
    %s223 = sphi 0, %s209
    %s227 = sphi 0, %s227
    %s229 = sphi 0, %s227
    %s230 = sphi 0, %s229
    %s244 = sphi 0, %s230
    %s248 = sphi 0, %s248
    %s250 = sphi 0, %s248
    %s251 = sphi 0, %s250
    %s265 = sphi 0, %s251
    %s273 = sphi 0, %s275
    %s276 = sphi 0, %s273
    %s277 = sphi 0, %s276
    %s293 = sphi 0, %s277
  $region4: #{dyhead_forward.1} parent=0 // loop_header_branch
    %19 = sbr.rel (%p17) target = $region8
  $region5: #{dyhead_forward.1} parent=0 // loop_body
    %s21 = ssub.s32 %s16, 1
    %s22 = ssub.s32 %s16, 2
    %s29 = sadd.s32 1, %s24
    %p30 = scmp.ge.s32.totalorder %s29, 2
    %s31 = scalar_select %p30, 0, %s29
    %s32 = sadd.s32 1, %s23
    %s33 = scalar_select %p30, %s32, %s23
    %p34 = scmp.ge.s32.totalorder %s33, 2
    %s35 = scalar_select %p34, 0, %s33
    %s36 = ssub.s32 %s23, %s35
    %s37 = ssub.s32 %s24, %s31
    %s38 = sor.u32 %s36, %s37
    %p39 = scmp.eq.s32.totalorder %s38, 0
    %s41 = sadd.s32 %s40, 1
    %s42 = scalar_select %p39, %s40, %s41
    %p45 = pneg %p39
    %p46 = scmp.eq.s32.totalorder %s16, 3
    %p47 = por %p45, %p46
    %p48 = scmp.ne.s32.totalorder %s40, %s43
    %p49 = scmp.eq.s32.totalorder %s16, 0
    %p50 = por %p48, %p49
    %p51 = scmp.ne.s32.totalorder %s40, %s43
    %p52 = scmp.eq.s32.totalorder %s21, 3
    %p53 = por %p51, %p52
    %p54 = scmp.ne.s32.totalorder %s43, %s44
    %p55 = scmp.eq.s32.totalorder %s21, 0
    %p56 = por %p54, %p55
    %p57 = scmp.ne.s32.totalorder %s43, %s44
    %p58 = scmp.eq.s32.totalorder %s22, 3
    %p59 = por %p57, %p58
    %p61 = scmp.ne.s32.totalorder %s44, %s60
    %p62 = scmp.eq.s32.totalorder %s22, 0
    %p63 = por %p61, %p62
    %s64 = sadd.s32 %s24, 1
    %s65 = smul.u32 %s64, 4
    %s66 = sadd.s32 %s31, 1
    %s67 = smul.u32 %s66, 4
    %s68 = ssub.s32 %s23, %s35
    %s69 = ssub.s32 %s65, %s67
    %s70 = sor.u32 %s68, %s69
    %p71 = scmp.eq.s32.totalorder %s70, 0
    %s73 = sadd.s32 %s72, 1
    %s74 = scalar_select %p71, %s72, %s73
    %p77 = pneg %p71
    %p78 = scmp.eq.s32.totalorder %s16, 3
    %p79 = por %p77, %p78
    %p80 = scmp.ne.s32.totalorder %s72, %s75
    %p81 = scmp.eq.s32.totalorder %s16, 0
    %p82 = por %p80, %p81
    %p83 = scmp.ne.s32.totalorder %s72, %s75
    %p84 = scmp.eq.s32.totalorder %s21, 3
    %p85 = por %p83, %p84
    %p86 = scmp.ne.s32.totalorder %s75, %s76
    %p87 = scmp.eq.s32.totalorder %s21, 0
    %p88 = por %p86, %p87
    %p89 = scmp.ne.s32.totalorder %s75, %s76
    %p90 = scmp.eq.s32.totalorder %s22, 3
    %p91 = por %p89, %p90
    %p93 = scmp.ne.s32.totalorder %s76, %s92
    %p94 = scmp.eq.s32.totalorder %s22, 0
    %p95 = por %p93, %p94
    %s96 = ssub.s32 %s23, %s35
    %p97 = scmp.eq.s32.totalorder %s96, 0
    %s99 = sadd.s32 %s98, 1
    %s100 = scalar_select %p97, %s98, %s99
    %p103 = pneg %p97
    %p104 = scmp.eq.s32.totalorder %s16, 3
    %p105 = por %p103, %p104
    %p106 = scmp.ne.s32.totalorder %s98, %s101
    %p107 = scmp.eq.s32.totalorder %s16, 0
    %p108 = por %p106, %p107
    %p109 = scmp.ne.s32.totalorder %s98, %s101
    %p110 = scmp.eq.s32.totalorder %s21, 3
    %p111 = por %p109, %p110
    %p112 = scmp.ne.s32.totalorder %s101, %s102
    %p113 = scmp.eq.s32.totalorder %s21, 0
    %p114 = por %p112, %p113
    %p115 = scmp.ne.s32.totalorder %s101, %s102
    %p116 = scmp.eq.s32.totalorder %s22, 3
    %p117 = por %p115, %p116
    %p119 = scmp.ne.s32.totalorder %s102, %s118
    %p120 = scmp.eq.s32.totalorder %s22, 0
    %p121 = por %p119, %p120
    %s123 = sadd.s32 %s122, 1
    %p126 = scmp.eq.s32.totalorder %s16, 3
    %p127 = scmp.ne.s32.totalorder %s122, %s124
    %p128 = scmp.eq.s32.totalorder %s16, 0
    %p129 = por %p127, %p128
    %p130 = scmp.ne.s32.totalorder %s122, %s124
    %p131 = scmp.eq.s32.totalorder %s21, 3
    %p132 = por %p130, %p131
    %p133 = scmp.ne.s32.totalorder %s124, %s125
    %p134 = scmp.eq.s32.totalorder %s21, 0
    %p135 = por %p133, %p134
    %p136 = scmp.ne.s32.totalorder %s124, %s125
    %p137 = scmp.eq.s32.totalorder %s22, 3
    %p138 = por %p136, %p137
    %p140 = scmp.ne.s32.totalorder %s125, %s139
    %p141 = scmp.eq.s32.totalorder %s22, 0
    %p142 = por %p140, %p141
    %s144 = sadd.s32 %s143, 1
    %p147 = scmp.eq.s32.totalorder %s16, 3
    %p148 = scmp.ne.s32.totalorder %s143, %s145
    %p149 = scmp.eq.s32.totalorder %s16, 0
    %p150 = por %p148, %p149
    %p151 = scmp.ne.s32.totalorder %s143, %s145
    %p152 = scmp.eq.s32.totalorder %s21, 3
    %p153 = por %p151, %p152
    %p154 = scmp.ne.s32.totalorder %s145, %s146
    %p155 = scmp.eq.s32.totalorder %s21, 0
    %p156 = por %p154, %p155
    %p157 = scmp.ne.s32.totalorder %s145, %s146
    %p158 = scmp.eq.s32.totalorder %s22, 3
    %p159 = por %p157, %p158
    %p161 = scmp.ne.s32.totalorder %s146, %s160
    %p162 = scmp.eq.s32.totalorder %s22, 0
    %p163 = por %p161, %p162
    %s165 = sadd.s32 %s164, 1
    %p168 = scmp.eq.s32.totalorder %s16, 3
    %p169 = scmp.ne.s32.totalorder %s164, %s166
    %p170 = scmp.eq.s32.totalorder %s16, 0
    %p171 = por %p169, %p170
    %p172 = scmp.ne.s32.totalorder %s164, %s166
    %p173 = scmp.eq.s32.totalorder %s21, 3
    %p174 = por %p172, %p173
    %p175 = scmp.ne.s32.totalorder %s166, %s167
    %p176 = scmp.eq.s32.totalorder %s21, 0
    %p177 = por %p175, %p176
    %p178 = scmp.ne.s32.totalorder %s166, %s167
    %p179 = scmp.eq.s32.totalorder %s22, 3
    %p180 = por %p178, %p179
    %p182 = scmp.ne.s32.totalorder %s167, %s181
    %p183 = scmp.eq.s32.totalorder %s22, 0
    %p184 = por %p182, %p183
    %s186 = sadd.s32 %s185, 1
    %p189 = scmp.eq.s32.totalorder %s16, 3
    %p190 = scmp.ne.s32.totalorder %s185, %s187
    %p191 = scmp.eq.s32.totalorder %s16, 0
    %p192 = por %p190, %p191
    %p193 = scmp.ne.s32.totalorder %s185, %s187
    %p194 = scmp.eq.s32.totalorder %s21, 3
    %p195 = por %p193, %p194
    %p196 = scmp.ne.s32.totalorder %s187, %s188
    %p197 = scmp.eq.s32.totalorder %s21, 0
    %p198 = por %p196, %p197
    %p199 = scmp.ne.s32.totalorder %s187, %s188
    %p200 = scmp.eq.s32.totalorder %s22, 3
    %p201 = por %p199, %p200
    %p203 = scmp.ne.s32.totalorder %s188, %s202
    %p204 = scmp.eq.s32.totalorder %s22, 0
    %p205 = por %p203, %p204
    %s207 = sadd.s32 %s206, 1
    %p210 = scmp.eq.s32.totalorder %s16, 3
    %p211 = scmp.ne.s32.totalorder %s206, %s208
    %p212 = scmp.eq.s32.totalorder %s16, 0
    %p213 = por %p211, %p212
    %p214 = scmp.ne.s32.totalorder %s206, %s208
    %p215 = scmp.eq.s32.totalorder %s21, 3
    %p216 = por %p214, %p215
    %p217 = scmp.ne.s32.totalorder %s208, %s209
    %p218 = scmp.eq.s32.totalorder %s21, 0
    %p219 = por %p217, %p218
    %p220 = scmp.ne.s32.totalorder %s208, %s209
    %p221 = scmp.eq.s32.totalorder %s22, 3
    %p222 = por %p220, %p221
    %p224 = scmp.ne.s32.totalorder %s209, %s223
    %p225 = scmp.eq.s32.totalorder %s22, 0
    %p226 = por %p224, %p225
    %s228 = sadd.s32 %s227, 1
    %p231 = scmp.eq.s32.totalorder %s16, 3
    %p232 = scmp.ne.s32.totalorder %s227, %s229
    %p233 = scmp.eq.s32.totalorder %s16, 0
    %p234 = por %p232, %p233
    %p235 = scmp.ne.s32.totalorder %s227, %s229
    %p236 = scmp.eq.s32.totalorder %s21, 3
    %p237 = por %p235, %p236
    %p238 = scmp.ne.s32.totalorder %s229, %s230
    %p239 = scmp.eq.s32.totalorder %s21, 0
    %p240 = por %p238, %p239
    %p241 = scmp.ne.s32.totalorder %s229, %s230
    %p242 = scmp.eq.s32.totalorder %s22, 3
    %p243 = por %p241, %p242
    %p245 = scmp.ne.s32.totalorder %s230, %s244
    %p246 = scmp.eq.s32.totalorder %s22, 0
    %p247 = por %p245, %p246
    %s249 = sadd.s32 %s248, 1
    %p252 = scmp.eq.s32.totalorder %s16, 3
    %p253 = scmp.ne.s32.totalorder %s248, %s250
    %p254 = scmp.eq.s32.totalorder %s16, 0
    %p255 = por %p253, %p254
    %p256 = scmp.ne.s32.totalorder %s248, %s250
    %p257 = scmp.eq.s32.totalorder %s21, 3
    %p258 = por %p256, %p257
    %p259 = scmp.ne.s32.totalorder %s250, %s251
    %p260 = scmp.eq.s32.totalorder %s21, 0
    %p261 = por %p259, %p260
    %p262 = scmp.ne.s32.totalorder %s250, %s251
    %p263 = scmp.eq.s32.totalorder %s22, 3
    %p264 = por %p262, %p263
    %p266 = scmp.ne.s32.totalorder %s251, %s265
    %p267 = scmp.eq.s32.totalorder %s22, 0
    %p268 = por %p266, %p267
    %s269 = ssub.s32 %s23, %s35
    %s270 = ssub.s32 %s24, %s31
    %s271 = sor.u32 %s269, %s270
    %p272 = scmp.eq.s32.totalorder %s271, 0
    %s274 = sadd.s32 %s273, 1
    %s275 = scalar_select %p272, %s273, %s274
    %p278 = pneg %p272
    %p279 = scmp.eq.s32.totalorder %s16, 3
    %p280 = por %p278, %p279
    %p281 = scmp.ne.s32.totalorder %s273, %s276
    %p282 = scmp.eq.s32.totalorder %s16, 0
    %p283 = por %p281, %p282
    %p284 = scmp.ne.s32.totalorder %s273, %s276
    %p285 = scmp.eq.s32.totalorder %s21, 3
    %p286 = por %p284, %p285
    %p287 = scmp.ne.s32.totalorder %s276, %s277
    %p288 = scmp.eq.s32.totalorder %s21, 0
    %p289 = por %p287, %p288
    %p290 = scmp.ne.s32.totalorder %s276, %s277
    %p291 = scmp.eq.s32.totalorder %s22, 3
    %p292 = por %p290, %p291
    %p294 = scmp.ne.s32.totalorder %s277, %s293
    %p295 = scmp.eq.s32.totalorder %s22, 0
    %p296 = por %p294, %p295
    %p297 = scmp.le.s32.totalorder 1, %s16
    %p298 = scmp.lt.s32.totalorder %s16, 5
    %p299 = pnand %p297, %p298
    %p300 = pneg %p299
    // Predicated region
    $region9: #{dyhead_forward.1} parent=5 // pred_check
      _
    $region10: #{dyhead_forward.1} parent=5 // pred_check_branch
      %302 = sbr.rel (%p299) target = $region12
    $region11: #{dyhead_forward.1} parent=5 // pred_region
      %s303 = ssub.s32 %s16, 1
      // Predicated region
      $region13: #{dyhead_forward.1} parent=11 // pred_check
        %p304 = pneg %p135
      $region14: #{dyhead_forward.1} parent=11 // pred_check_branch
        %306 = sbr.rel (%p304) target = $region16
      $region15: #{dyhead_forward.1} parent=11 // pred_region
        _
      $region16: #{dyhead_forward.1} parent=11 // pred_fallthru
        _
      // Predicated region
      $region17: #{dyhead_forward.1} parent=11 // pred_check
        %p307 = pneg %p156
      $region18: #{dyhead_forward.1} parent=11 // pred_check_branch
        %309 = sbr.rel (%p307) target = $region20
      $region19: #{dyhead_forward.1} parent=11 // pred_region
        _
      $region20: #{dyhead_forward.1} parent=11 // pred_fallthru
        _
      // Predicated region
      $region21: #{dyhead_forward.1} parent=11 // pred_check
        %p310 = pneg %p177
      $region22: #{dyhead_forward.1} parent=11 // pred_check_branch
        %312 = sbr.rel (%p310) target = $region24
      $region23: #{dyhead_forward.1} parent=11 // pred_region
        _
      $region24: #{dyhead_forward.1} parent=11 // pred_fallthru
        _
      // Predicated region
      $region25: #{dyhead_forward.1} parent=11 // pred_check
        %p313 = pneg %p198
      $region26: #{dyhead_forward.1} parent=11 // pred_check_branch
        %315 = sbr.rel (%p313) target = $region28
      $region27: #{dyhead_forward.1} parent=11 // pred_region
        _
      $region28: #{dyhead_forward.1} parent=11 // pred_fallthru
        _
      // Predicated region
      $region29: #{dyhead_forward.1} parent=11 // pred_check
        %p316 = pneg %p219
      $region30: #{dyhead_forward.1} parent=11 // pred_check_branch
        %318 = sbr.rel (%p316) target = $region32
      $region31: #{dyhead_forward.1} parent=11 // pred_region
        _
      $region32: #{dyhead_forward.1} parent=11 // pred_fallthru
        _
      // Predicated region
      $region33: #{dyhead_forward.1} parent=11 // pred_check
        %p319 = pneg %p240
      $region34: #{dyhead_forward.1} parent=11 // pred_check_branch
        %321 = sbr.rel (%p319) target = $region36
      $region35: #{dyhead_forward.1} parent=11 // pred_region
        _
      $region36: #{dyhead_forward.1} parent=11 // pred_fallthru
        _
      // Predicated region
      $region37: #{dyhead_forward.1} parent=11 // pred_check
        %p322 = pneg %p261
      $region38: #{dyhead_forward.1} parent=11 // pred_check_branch
        %324 = sbr.rel (%p322) target = $region40
      $region39: #{dyhead_forward.1} parent=11 // pred_region
        _
      $region40: #{dyhead_forward.1} parent=11 // pred_fallthru
        _
    $region12: #{dyhead_forward.1} parent=5 // pred_fallthru
      _
    %p325 = scmp.lt.s32.totalorder %s16, 4
    // Predicated region
    $region41: #{dyhead_forward.1} parent=5 // pred_check
      %p326 = pneg %p325
    $region42: #{dyhead_forward.1} parent=5 // pred_check_branch
      %328 = sbr.rel (%p326) target = $region44
    $region43: #{dyhead_forward.1} parent=5 // pred_region
      // Predicated region
      $region45: #{dyhead_forward.1} parent=43 // pred_check
        %p329 = pneg %p50
      $region46: #{dyhead_forward.1} parent=43 // pred_check_branch
        %331 = sbr.rel (%p329) target = $region48
      $region47: #{dyhead_forward.1} parent=43 // pred_region
        %s332 = smul.u32 8, %s24
        %s333 = ssub.s32 18, %s332
        %p334 = scmp.lt.s32.totalorder %s333, 8
        %s335 = scalar_select %p334, %s333, 8
        %s336 = smul.u32 64, %s335
        %s337 = smul.u32 %s336, 3
        %p338 = scmp.lt.s32.totalorder %s23, 1
        %s339 = scalar_select %p338, %s23, 1
        %p340 = scmp.lt.s32.totalorder %s332, 17
        %s341 = scalar_select %p340, %s332, 17
        %s342 = smul.addr %s341, 3
        %s343 = smul.addr %s339, 54
        %s344 = sadd.s32 %s342, %s343
        %s345 = smul.addr %s344, 4
        %s346 = scalar_lea.vmem %s0, %s345
        %s347 = smul.u32 8, %s24
        %s348 = ssub.s32 18, %s347
        %p349 = scmp.lt.s32.totalorder %s348, 8
        %s350 = scalar_select %p349, %s348, 8
        %s351 = smul.u32 64, %s350
        %s352 = smul.u32 %s351, 3
      $region48: #{dyhead_forward.1} parent=43 // pred_fallthru
        _
      // Predicated region
      $region49: #{dyhead_forward.1} parent=43 // pred_check
        %p353 = pneg %p82
      $region50: #{dyhead_forward.1} parent=43 // pred_check_branch
        %355 = sbr.rel (%p353) target = $region52
      $region51: #{dyhead_forward.1} parent=43 // pred_region
        %s356 = sadd.s32 %s24, 1
        %s357 = smul.u32 %s356, 4
        %s358 = smul.u32 2, %s357
        %p359 = scmp.lt.s32.totalorder %s23, 1
        %s360 = scalar_select %p359, %s23, 1
        %p361 = scmp.lt.s32.totalorder %s358, 17
        %s362 = scalar_select %p361, %s358, 17
        %s363 = smul.addr %s362, 3
        %s364 = smul.addr %s360, 54
        %s365 = sadd.s32 %s363, %s364
        %s366 = smul.addr %s365, 4
        %s367 = scalar_lea.vmem %s1, %s366
        %s368 = sadd.s32 %s24, 1
        %s369 = smul.u32 %s368, 4
        %s370 = smul.u32 2, %s369
      $region52: #{dyhead_forward.1} parent=43 // pred_fallthru
        _
      // Predicated region
      $region53: #{dyhead_forward.1} parent=43 // pred_check
        %p371 = pneg %p108
      $region54: #{dyhead_forward.1} parent=43 // pred_check_branch
        %373 = sbr.rel (%p371) target = $region56
      $region55: #{dyhead_forward.1} parent=43 // pred_region
        %p374 = scmp.lt.s32.totalorder %s23, 1
        %s375 = scalar_select %p374, %s23, 1
        %s376 = scalar_lea.vmem %s2, %s375
      $region56: #{dyhead_forward.1} parent=43 // pred_fallthru
        _
    $region44: #{dyhead_forward.1} parent=5 // pred_fallthru
      _
    %p377 = scmp.le.s32.totalorder 1, %s16
    %p378 = scmp.lt.s32.totalorder %s16, 5
    %p379 = pnand %p377, %p378
    %p380 = pneg %p379
    // Predicated region
    $region57: #{dyhead_forward.1} parent=5 // pred_check
      _
    $region58: #{dyhead_forward.1} parent=5 // pred_check_branch
      %382 = sbr.rel (%p379) target = $region60
    $region59: #{dyhead_forward.1} parent=5 // pred_region
      %s383 = ssub.s32 %s16, 1
      %s384 = smul.u32 8, %s26
      %s385 = ssub.s32 18, %s384
      %p386 = scmp.lt.s32.totalorder %s385, 8
      %s387 = scalar_select %p386, %s385, 8
      %s388 = smul.u32 64, %s387
      %s389 = smul.u32 %s388, 3
      %p390 = scmp.lt.s32.totalorder %s25, 1
      %s391 = scalar_select %p390, %s25, 1
      %p392 = scmp.lt.s32.totalorder %s384, 17
      %s393 = scalar_select %p392, %s384, 17
      %s394 = smul.addr %s393, 3
      %s395 = smul.addr %s391, 54
      %s396 = sadd.s32 %s394, %s395
      %s397 = smul.addr %s396, 4
      %s398 = scalar_lea.vmem %s0, %s397
      %p399 = pneg %p56
      %p400 = pneg %p53
      %s401 = sadd.s32 %s26, 1
      %s402 = smul.u32 %s401, 4
      %s403 = smul.u32 2, %s402
      %p404 = scmp.lt.s32.totalorder %s25, 1
      %s405 = scalar_select %p404, %s25, 1
      %p406 = scmp.lt.s32.totalorder %s403, 17
      %s407 = scalar_select %p406, %s403, 17
      %s408 = smul.addr %s407, 3
      %s409 = smul.addr %s405, 54
      %s410 = sadd.s32 %s408, %s409
      %s411 = smul.addr %s410, 4
      %s412 = scalar_lea.vmem %s1, %s411
      %p413 = pneg %p88
      %p414 = pneg %p85
      %p415 = scmp.lt.s32.totalorder %s25, 1
      %s416 = scalar_select %p415, %s25, 1
      %s417 = scalar_lea.vmem %s2, %s416
      %p418 = pneg %p114
      %p419 = pneg %p111
      %p420 = pneg %p135
      %p421 = pneg %p132
      %p422 = pneg %p156
      %p423 = pneg %p153
      %p424 = pneg %p177
      %p425 = pneg %p174
      %p426 = pneg %p198
      %p427 = pneg %p195
      %p428 = pneg %p219
      %p429 = pneg %p216
      %p430 = pneg %p240
      %p431 = pneg %p237
      %p432 = pneg %p261
      %p433 = pneg %p258
      %p434 = pneg %p289
      %p435 = pneg %p286
      %s436 = smul.u32 8, %s26
      %p437 = scmp.lt.s32.totalorder %s25, 1
      %s438 = scalar_select %p437, %s25, 1
      %p439 = scmp.lt.s32.totalorder %s436, 15
      %s440 = scalar_select %p439, %s436, 15
      %s441 = smul.addr %s440, 3
      %s442 = smul.addr %s438, 48
      %s443 = sadd.s32 %s441, %s442
      %s444 = smul.addr %s443, 4
      %s445 = scalar_lea.vmem %s10, %s444
      %s446 = smul.u32 8, %s26
      %s447 = ssub.s32 18, %s446
      %p448 = scmp.lt.s32.totalorder %s447, 8
      %s449 = scalar_select %p448, %s447, 8
      %s450 = smul.u32 64, %s449
      %s451 = smul.u32 %s450, 3
      %p452 = scmp.lt.s32.totalorder %s25, 1
      %s453 = scalar_select %p452, %s25, 1
      %p454 = scmp.lt.s32.totalorder %s446, 17
      %s455 = scalar_select %p454, %s446, 17
      %s456 = smul.addr %s455, 3
      %s457 = smul.addr %s453, 54
      %s458 = sadd.s32 %s456, %s457
      %s459 = smul.addr %s458, 4
      %s460 = scalar_lea.vmem %s0, %s459
      %s461 = smul.u32 8, %s26
      %s462 = ssub.s32 18, %s461
      %p463 = scmp.lt.s32.totalorder %s462, 8
      %s464 = scalar_select %p463, %s462, 8
      %s465 = smul.u32 64, %s464
      %s466 = smul.u32 %s465, 3
      %s467 = sadd.s32 %s26, 1
      %s468 = smul.u32 %s467, 4
      %s469 = smul.u32 2, %s468
      %p470 = scmp.lt.s32.totalorder %s25, 1
      %s471 = scalar_select %p470, %s25, 1
      %p472 = scmp.lt.s32.totalorder %s469, 17
      %s473 = scalar_select %p472, %s469, 17
      %s474 = smul.addr %s473, 3
      %s475 = smul.addr %s471, 54
      %s476 = sadd.s32 %s474, %s475
      %s477 = smul.addr %s476, 4
      %s478 = scalar_lea.vmem %s1, %s477
      %s479 = sadd.s32 %s26, 1
      %s480 = smul.u32 %s479, 4
      %s481 = smul.u32 2, %s480
      %p482 = scmp.lt.s32.totalorder %s25, 1
      %s483 = scalar_select %p482, %s25, 1
      %s484 = scalar_lea.vmem %s2, %s483
      %s485 = smul.u32 8, %s26
      %p486 = scmp.lt.s32.totalorder %s25, 1
      %s487 = scalar_select %p486, %s25, 1
      %p488 = scmp.lt.s32.totalorder %s485, 15
      %s489 = scalar_select %p488, %s485, 15
      %s490 = smul.addr %s489, 3
      %s491 = smul.addr %s487, 48
      %s492 = sadd.s32 %s490, %s491
      %s493 = smul.addr %s492, 4
      %s494 = scalar_lea.vmem %s10, %s493
      %s495 = smul.u32 8, %s26
      %v497 = vld [vmem:[%s460] sm:$0xf]
      %v498 = vld [vmem:[%s460 + $0x4] sm:$0xf]
      %v499 = vld [vmem:[%s460 + $0x8] sm:$0xf]
      %v500 = vld [vmem:[%s460 + $0xc] sm:$0xf]
      %v501 = vld [vmem:[%s460 + $0x10] sm:$0xf]
      %v502 = vld [vmem:[%s460 + $0x14] sm:$0xf]
      %v503 = vld [vmem:[%s460 + $0x18] sm:$0xf]
      %v504 = vld [vmem:[%s460 + $0x1c] sm:$0xf]
      %v505 = vld [vmem:[%s460 + $0x20] sm:$0xf]
      %v506 = vld [vmem:[%s460 + $0x24] sm:$0xf]
      %v507 = vld [vmem:[%s460 + $0x28] sm:$0xf]
      %v508 = vld [vmem:[%s460 + $0x2c] sm:$0xf]
      %v509 = vld [vmem:[%s460 + $0x30] sm:$0xf]
      %v510 = vld [vmem:[%s460 + $0x34] sm:$0xf]
      %v511 = vld [vmem:[%s460 + $0x38] sm:$0xf]
      %v512 = vld [vmem:[%s460 + $0x3c] sm:$0xf]
      %v513 = vld [vmem:[%s460 + $0x40] sm:$0xf]
      %v514 = vld [vmem:[%s460 + $0x44] sm:$0xf]
      %v515 = vld [vmem:[%s460 + $0x48] sm:$0xf]
      %v516 = vld [vmem:[%s460 + $0x4c] sm:$0xf]
      %v517 = vld [vmem:[%s460 + $0x50] sm:$0xf]
      %v518 = vld [vmem:[%s460 + $0x54] sm:$0xf]
      %v519 = vld [vmem:[%s460 + $0x58] sm:$0xf]
      %v520 = vld [vmem:[%s460 + $0x5c] sm:$0xf]
      %v521 = vunpack.c.l.bf16 %v497
      %v522 = vunpack.c.l.bf16 %v498
      %v523 = vunpack.c.l.bf16 %v499
      %v524 = vunpack.c.l.bf16 %v500
      %v525 = vunpack.c.l.bf16 %v501
      %v526 = vunpack.c.l.bf16 %v502
      %v527 = vunpack.c.l.bf16 %v503
      %v528 = vunpack.c.l.bf16 %v504
      %v529 = vunpack.c.l.bf16 %v505
      %v530 = vunpack.c.l.bf16 %v506
      %v531 = vunpack.c.l.bf16 %v507
      %v532 = vunpack.c.l.bf16 %v508
      %v533 = vunpack.c.l.bf16 %v509
      %v534 = vunpack.c.l.bf16 %v510
      %v535 = vunpack.c.l.bf16 %v511
      %v536 = vunpack.c.l.bf16 %v512
      %v537 = vunpack.c.l.bf16 %v513
      %v538 = vunpack.c.l.bf16 %v514
      %v539 = vunpack.c.l.bf16 %v515
      %v540 = vunpack.c.l.bf16 %v516
      %v541 = vunpack.c.l.bf16 %v517
      %v542 = vunpack.c.l.bf16 %v518
      %v543 = vunpack.c.l.bf16 %v519
      %v544 = vunpack.c.l.bf16 %v520
      %v545 = vld [vmem:[%s478] sm:$0xf]
      %v546 = vld [vmem:[%s478 + $0x4] sm:$0xf]
      %v547 = vld [vmem:[%s478 + $0x8] sm:$0xf]
      %v548 = vld [vmem:[%s478 + $0xc] sm:$0xf]
      %v549 = vld [vmem:[%s478 + $0x10] sm:$0xf]
      %v550 = vld [vmem:[%s478 + $0x14] sm:$0xf]
      %v551 = vunpack.c.l.bf16 %v545
      %v552 = vunpack.c.l.bf16 %v546
      %v553 = vunpack.c.l.bf16 %v547
      %v554 = vunpack.c.l.bf16 %v548
      %v555 = vunpack.c.l.bf16 %v549
      %v556 = vunpack.c.l.bf16 %v550
      %v557 = vld [vmem:[%s3] sm:$0xff]
      %v558 = vld [vmem:[%s3 + $0x8] sm:$0x1]
      %v559 = vlaneseq
      %v560 = vshrl.u32 %v559, 7
      %v561 = vsub.s32 0, %v560
      %v562 = vrot.slane %v557, %v561
      %v563 = vmul.f32 %v521, %v562
      %v564 = vmul.f32 %v522, %v562
      %v565 = vmul.f32 %v523, %v562
      %v566 = vmul.f32 %v524, %v562
      %v567 = vmul.f32 %v525, %v562
      %v568 = vmul.f32 %v526, %v562
      %v569 = vmul.f32 %v527, %v562
      %v570 = vmul.f32 %v528, %v562
      %v571 = vmul.f32 %v529, %v562
      %v572 = vmul.f32 %v530, %v562
      %v573 = vmul.f32 %v531, %v562
      %v574 = vmul.f32 %v532, %v562
      %v575 = vmul.f32 %v533, %v562
      %v576 = vmul.f32 %v534, %v562
      %v577 = vmul.f32 %v535, %v562
      %v578 = vmul.f32 %v536, %v562
      %v579 = vmul.f32 %v537, %v562
      %v580 = vmul.f32 %v538, %v562
      %v581 = vmul.f32 %v539, %v562
      %v582 = vmul.f32 %v540, %v562
      %v583 = vmul.f32 %v541, %v562
      %v584 = vmul.f32 %v542, %v562
      %v585 = vmul.f32 %v543, %v562
      %v586 = vmul.f32 %v544, %v562
      %v587 = vadd.f32 %v563, 0.0
      %v588 = vadd.f32 %v564, 0.0
      %v589 = vadd.f32 %v565, 0.0
      %v590 = vadd.f32 %v566, 0.0
      %v591 = vadd.f32 %v567, 0.0
      %v592 = vadd.f32 %v568, 0.0
      %v593 = vadd.f32 %v569, 0.0
      %v594 = vadd.f32 %v570, 0.0
      %v595 = vadd.f32 %v571, 0.0
      %v596 = vadd.f32 %v572, 0.0
      %v597 = vadd.f32 %v573, 0.0
      %v598 = vadd.f32 %v574, 0.0
      %v599 = vadd.f32 %v575, 0.0
      %v600 = vadd.f32 %v576, 0.0
      %v601 = vadd.f32 %v577, 0.0
      %v602 = vadd.f32 %v578, 0.0
      %v603 = vadd.f32 %v579, 0.0
      %v604 = vadd.f32 %v580, 0.0
      %v605 = vadd.f32 %v581, 0.0
      %v606 = vadd.f32 %v582, 0.0
      %v607 = vadd.f32 %v583, 0.0
      %v608 = vadd.f32 %v584, 0.0
      %v609 = vadd.f32 %v585, 0.0
      %v610 = vadd.f32 %v586, 0.0
      %v611 = vlaneseq
      %v612 = vshrl.u32 %v611, 7
      %v613 = vsub.s32 1, %v612
      %v614 = vrot.slane %v557, %v613
      %v615 = vmul.f32 %v521, %v614
      %v616 = vmul.f32 %v522, %v614
      %v617 = vmul.f32 %v523, %v614
      %v618 = vmul.f32 %v524, %v614
      %v619 = vmul.f32 %v525, %v614
      %v620 = vmul.f32 %v526, %v614
      %v621 = vmul.f32 %v527, %v614
      %v622 = vmul.f32 %v528, %v614
      %v623 = vmul.f32 %v529, %v614
      %v624 = vmul.f32 %v530, %v614
      %v625 = vmul.f32 %v531, %v614
      %v626 = vmul.f32 %v532, %v614
      %v627 = vmul.f32 %v533, %v614
      %v628 = vmul.f32 %v534, %v614
      %v629 = vmul.f32 %v535, %v614
      %v630 = vmul.f32 %v536, %v614
      %v631 = vmul.f32 %v537, %v614
      %v632 = vmul.f32 %v538, %v614
      %v633 = vmul.f32 %v539, %v614
      %v634 = vmul.f32 %v540, %v614
      %v635 = vmul.f32 %v541, %v614
      %v636 = vmul.f32 %v542, %v614
      %v637 = vmul.f32 %v543, %v614
      %v638 = vmul.f32 %v544, %v614
      %v639 = vmul.f32 %v551, %v614
      %vm665 = vcmask 1046528
      %v666 = vrot.slane %v615, 1
      %v667 = vrot.slane %v616, 1
      %v668 = vsel %vm665, %v666, %v667
      %v669 = vrot.slane %v617, 1
      %v670 = vsel %vm665, %v667, %v669
      %v671 = vrot.slane %v618, 1
      %v672 = vsel %vm665, %v669, %v671
      %v673 = vrot.slane %v619, 1
      %v674 = vsel %vm665, %v671, %v673
      %v675 = vrot.slane %v620, 1
      %v676 = vsel %vm665, %v673, %v675
      %v677 = vrot.slane %v621, 1
      %v678 = vsel %vm665, %v675, %v677
      %v679 = vrot.slane %v622, 1
      %v680 = vsel %vm665, %v677, %v679
      %v681 = vrot.slane %v623, 1
      %v682 = vsel %vm665, %v679, %v681
      %v683 = vrot.slane %v624, 1
      %v684 = vsel %vm665, %v681, %v683
      %v685 = vrot.slane %v625, 1
      %v686 = vsel %vm665, %v683, %v685
      %v687 = vrot.slane %v626, 1
      %v688 = vsel %vm665, %v685, %v687
      %v689 = vrot.slane %v627, 1
      %v690 = vsel %vm665, %v687, %v689
      %v691 = vrot.slane %v628, 1
      %v692 = vsel %vm665, %v689, %v691
      %v693 = vrot.slane %v629, 1
      %v694 = vsel %vm665, %v691, %v693
      %v695 = vrot.slane %v630, 1
      %v696 = vsel %vm665, %v693, %v695
      %v697 = vrot.slane %v631, 1
      %v698 = vsel %vm665, %v695, %v697
      %v699 = vrot.slane %v632, 1
      %v700 = vsel %vm665, %v697, %v699
      %v701 = vrot.slane %v633, 1
      %v702 = vsel %vm665, %v699, %v701
      %v703 = vrot.slane %v634, 1
      %v704 = vsel %vm665, %v701, %v703
      %v705 = vrot.slane %v635, 1
      %v706 = vsel %vm665, %v703, %v705
      %v707 = vrot.slane %v636, 1
      %v708 = vsel %vm665, %v705, %v707
      %v709 = vrot.slane %v637, 1
      %v710 = vsel %vm665, %v707, %v709
      %v711 = vrot.slane %v638, 1
      %v712 = vsel %vm665, %v709, %v711
      %v713 = vrot.slane %v639, 1
      %v714 = vsel %vm665, %v711, %v713
      %v739 = vadd.f32 %v587, %v668
      %v740 = vadd.f32 %v588, %v670
      %v741 = vadd.f32 %v589, %v672
      %v742 = vadd.f32 %v590, %v674
      %v743 = vadd.f32 %v591, %v676
      %v744 = vadd.f32 %v592, %v678
      %v745 = vadd.f32 %v593, %v680
      %v746 = vadd.f32 %v594, %v682
      %v747 = vadd.f32 %v595, %v684
      %v748 = vadd.f32 %v596, %v686
      %v749 = vadd.f32 %v597, %v688
      %v750 = vadd.f32 %v598, %v690
      %v751 = vadd.f32 %v599, %v692
      %v752 = vadd.f32 %v600, %v694
      %v753 = vadd.f32 %v601, %v696
      %v754 = vadd.f32 %v602, %v698
      %v755 = vadd.f32 %v603, %v700
      %v756 = vadd.f32 %v604, %v702
      %v757 = vadd.f32 %v605, %v704
      %v758 = vadd.f32 %v606, %v706
      %v759 = vadd.f32 %v607, %v708
      %v760 = vadd.f32 %v608, %v710
      %v761 = vadd.f32 %v609, %v712
      %v762 = vadd.f32 %v610, %v714
      %v763 = vlaneseq
      %v764 = vshrl.u32 %v763, 7
      %v765 = vsub.s32 2, %v764
      %v766 = vrot.slane %v557, %v765
      %v767 = vmul.f32 %v521, %v766
      %v768 = vmul.f32 %v522, %v766
      %v769 = vmul.f32 %v523, %v766
      %v770 = vmul.f32 %v524, %v766
      %v771 = vmul.f32 %v525, %v766
      %v772 = vmul.f32 %v526, %v766
      %v773 = vmul.f32 %v527, %v766
      %v774 = vmul.f32 %v528, %v766
      %v775 = vmul.f32 %v529, %v766
      %v776 = vmul.f32 %v530, %v766
      %v777 = vmul.f32 %v531, %v766
      %v778 = vmul.f32 %v532, %v766
      %v779 = vmul.f32 %v533, %v766
      %v780 = vmul.f32 %v534, %v766
      %v781 = vmul.f32 %v535, %v766
      %v782 = vmul.f32 %v536, %v766
      %v783 = vmul.f32 %v537, %v766
      %v784 = vmul.f32 %v538, %v766
      %v785 = vmul.f32 %v539, %v766
      %v786 = vmul.f32 %v540, %v766
      %v787 = vmul.f32 %v541, %v766
      %v788 = vmul.f32 %v542, %v766
      %v789 = vmul.f32 %v543, %v766
      %v790 = vmul.f32 %v544, %v766
      %v791 = vmul.f32 %v551, %v766
      %vm817 = vcmask 1045504
      %v818 = vrot.slane %v767, 2
      %v819 = vrot.slane %v768, 2
      %v820 = vsel %vm817, %v818, %v819
      %v821 = vrot.slane %v769, 2
      %v822 = vsel %vm817, %v819, %v821
      %v823 = vrot.slane %v770, 2
      %v824 = vsel %vm817, %v821, %v823
      %v825 = vrot.slane %v771, 2
      %v826 = vsel %vm817, %v823, %v825
      %v827 = vrot.slane %v772, 2
      %v828 = vsel %vm817, %v825, %v827
      %v829 = vrot.slane %v773, 2
      %v830 = vsel %vm817, %v827, %v829
      %v831 = vrot.slane %v774, 2
      %v832 = vsel %vm817, %v829, %v831
      %v833 = vrot.slane %v775, 2
      %v834 = vsel %vm817, %v831, %v833
      %v835 = vrot.slane %v776, 2
      %v836 = vsel %vm817, %v833, %v835
      %v837 = vrot.slane %v777, 2
      %v838 = vsel %vm817, %v835, %v837
      %v839 = vrot.slane %v778, 2
      %v840 = vsel %vm817, %v837, %v839
      %v841 = vrot.slane %v779, 2
      %v842 = vsel %vm817, %v839, %v841
      %v843 = vrot.slane %v780, 2
      %v844 = vsel %vm817, %v841, %v843
      %v845 = vrot.slane %v781, 2
      %v846 = vsel %vm817, %v843, %v845
      %v847 = vrot.slane %v782, 2
      %v848 = vsel %vm817, %v845, %v847
      %v849 = vrot.slane %v783, 2
      %v850 = vsel %vm817, %v847, %v849
      %v851 = vrot.slane %v784, 2
      %v852 = vsel %vm817, %v849, %v851
      %v853 = vrot.slane %v785, 2
      %v854 = vsel %vm817, %v851, %v853
      %v855 = vrot.slane %v786, 2
      %v856 = vsel %vm817, %v853, %v855
      %v857 = vrot.slane %v787, 2
      %v858 = vsel %vm817, %v855, %v857
      %v859 = vrot.slane %v788, 2
      %v860 = vsel %vm817, %v857, %v859
      %v861 = vrot.slane %v789, 2
      %v862 = vsel %vm817, %v859, %v861
      %v863 = vrot.slane %v790, 2
      %v864 = vsel %vm817, %v861, %v863
      %v865 = vrot.slane %v791, 2
      %v866 = vsel %vm817, %v863, %v865
      %v891 = vadd.f32 %v739, %v820
      %v892 = vadd.f32 %v740, %v822
      %v893 = vadd.f32 %v741, %v824
      %v894 = vadd.f32 %v742, %v826
      %v895 = vadd.f32 %v743, %v828
      %v896 = vadd.f32 %v744, %v830
      %v897 = vadd.f32 %v745, %v832
      %v898 = vadd.f32 %v746, %v834
      %v899 = vadd.f32 %v747, %v836
      %v900 = vadd.f32 %v748, %v838
      %v901 = vadd.f32 %v749, %v840
      %v902 = vadd.f32 %v750, %v842
      %v903 = vadd.f32 %v751, %v844
      %v904 = vadd.f32 %v752, %v846
      %v905 = vadd.f32 %v753, %v848
      %v906 = vadd.f32 %v754, %v850
      %v907 = vadd.f32 %v755, %v852
      %v908 = vadd.f32 %v756, %v854
      %v909 = vadd.f32 %v757, %v856
      %v910 = vadd.f32 %v758, %v858
      %v911 = vadd.f32 %v759, %v860
      %v912 = vadd.f32 %v760, %v862
      %v913 = vadd.f32 %v761, %v864
      %v914 = vadd.f32 %v762, %v866
      %v915 = vlaneseq
      %v916 = vshrl.u32 %v915, 7
      %v917 = vsub.s32 3, %v916
      %v918 = vrot.slane %v557, %v917
      %v919 = vmul.f32 %v524, %v918
      %v920 = vmul.f32 %v525, %v918
      %v921 = vmul.f32 %v526, %v918
      %v922 = vmul.f32 %v527, %v918
      %v923 = vmul.f32 %v528, %v918
      %v924 = vmul.f32 %v529, %v918
      %v925 = vmul.f32 %v530, %v918
      %v926 = vmul.f32 %v531, %v918
      %v927 = vmul.f32 %v532, %v918
      %v928 = vmul.f32 %v533, %v918
      %v929 = vmul.f32 %v534, %v918
      %v930 = vmul.f32 %v535, %v918
      %v931 = vmul.f32 %v536, %v918
      %v932 = vmul.f32 %v537, %v918
      %v933 = vmul.f32 %v538, %v918
      %v934 = vmul.f32 %v539, %v918
      %v935 = vmul.f32 %v540, %v918
      %v936 = vmul.f32 %v541, %v918
      %v937 = vmul.f32 %v542, %v918
      %v938 = vmul.f32 %v543, %v918
      %v939 = vmul.f32 %v544, %v918
      %v940 = vmul.f32 %v551, %v918
      %v941 = vmul.f32 %v552, %v918
      %v942 = vmul.f32 %v553, %v918
      %v943 = vadd.f32 %v891, %v919
      %v944 = vadd.f32 %v892, %v920
      %v945 = vadd.f32 %v893, %v921
      %v946 = vadd.f32 %v894, %v922
      %v947 = vadd.f32 %v895, %v923
      %v948 = vadd.f32 %v896, %v924
      %v949 = vadd.f32 %v897, %v925
      %v950 = vadd.f32 %v898, %v926
      %v951 = vadd.f32 %v899, %v927
      %v952 = vadd.f32 %v900, %v928
      %v953 = vadd.f32 %v901, %v929
      %v954 = vadd.f32 %v902, %v930
      %v955 = vadd.f32 %v903, %v931
      %v956 = vadd.f32 %v904, %v932
      %v957 = vadd.f32 %v905, %v933
      %v958 = vadd.f32 %v906, %v934
      %v959 = vadd.f32 %v907, %v935
      %v960 = vadd.f32 %v908, %v936
      %v961 = vadd.f32 %v909, %v937
      %v962 = vadd.f32 %v910, %v938
      %v963 = vadd.f32 %v911, %v939
      %v964 = vadd.f32 %v912, %v940
      %v965 = vadd.f32 %v913, %v941
      %v966 = vadd.f32 %v914, %v942
      %v967 = vlaneseq
      %v968 = vshrl.u32 %v967, 7
      %v969 = vsub.s32 4, %v968
      %v970 = vrot.slane %v557, %v969
      %v971 = vmul.f32 %v524, %v970
      %v972 = vmul.f32 %v525, %v970
      %v973 = vmul.f32 %v526, %v970
      %v974 = vmul.f32 %v527, %v970
      %v975 = vmul.f32 %v528, %v970
      %v976 = vmul.f32 %v529, %v970
      %v977 = vmul.f32 %v530, %v970
      %v978 = vmul.f32 %v531, %v970
      %v979 = vmul.f32 %v532, %v970
      %v980 = vmul.f32 %v533, %v970
      %v981 = vmul.f32 %v534, %v970
      %v982 = vmul.f32 %v535, %v970
      %v983 = vmul.f32 %v536, %v970
      %v984 = vmul.f32 %v537, %v970
      %v985 = vmul.f32 %v538, %v970
      %v986 = vmul.f32 %v539, %v970
      %v987 = vmul.f32 %v540, %v970
      %v988 = vmul.f32 %v541, %v970
      %v989 = vmul.f32 %v542, %v970
      %v990 = vmul.f32 %v543, %v970
      %v991 = vmul.f32 %v544, %v970
      %v992 = vmul.f32 %v551, %v970
      %v993 = vmul.f32 %v552, %v970
      %v994 = vmul.f32 %v553, %v970
      %v995 = vmul.f32 %v554, %v970
      %v1021 = vrot.slane %v971, 1
      %v1022 = vrot.slane %v972, 1
      %v1023 = vsel %vm665, %v1021, %v1022
      %v1024 = vrot.slane %v973, 1
      %v1025 = vsel %vm665, %v1022, %v1024
      %v1026 = vrot.slane %v974, 1
      %v1027 = vsel %vm665, %v1024, %v1026
      %v1028 = vrot.slane %v975, 1
      %v1029 = vsel %vm665, %v1026, %v1028
      %v1030 = vrot.slane %v976, 1
      %v1031 = vsel %vm665, %v1028, %v1030
      %v1032 = vrot.slane %v977, 1
      %v1033 = vsel %vm665, %v1030, %v1032
      %v1034 = vrot.slane %v978, 1
      %v1035 = vsel %vm665, %v1032, %v1034
      %v1036 = vrot.slane %v979, 1
      %v1037 = vsel %vm665, %v1034, %v1036
      %v1038 = vrot.slane %v980, 1
      %v1039 = vsel %vm665, %v1036, %v1038
      %v1040 = vrot.slane %v981, 1
      %v1041 = vsel %vm665, %v1038, %v1040
      %v1042 = vrot.slane %v982, 1
      %v1043 = vsel %vm665, %v1040, %v1042
      %v1044 = vrot.slane %v983, 1
      %v1045 = vsel %vm665, %v1042, %v1044
      %v1046 = vrot.slane %v984, 1
      %v1047 = vsel %vm665, %v1044, %v1046
      %v1048 = vrot.slane %v985, 1
      %v1049 = vsel %vm665, %v1046, %v1048
      %v1050 = vrot.slane %v986, 1
      %v1051 = vsel %vm665, %v1048, %v1050
      %v1052 = vrot.slane %v987, 1
      %v1053 = vsel %vm665, %v1050, %v1052
      %v1054 = vrot.slane %v988, 1
      %v1055 = vsel %vm665, %v1052, %v1054
      %v1056 = vrot.slane %v989, 1
      %v1057 = vsel %vm665, %v1054, %v1056
      %v1058 = vrot.slane %v990, 1
      %v1059 = vsel %vm665, %v1056, %v1058
      %v1060 = vrot.slane %v991, 1
      %v1061 = vsel %vm665, %v1058, %v1060
      %v1062 = vrot.slane %v992, 1
      %v1063 = vsel %vm665, %v1060, %v1062
      %v1064 = vrot.slane %v993, 1
      %v1065 = vsel %vm665, %v1062, %v1064
      %v1066 = vrot.slane %v994, 1
      %v1067 = vsel %vm665, %v1064, %v1066
      %v1068 = vrot.slane %v995, 1
      %v1069 = vsel %vm665, %v1066, %v1068
      %v1094 = vadd.f32 %v943, %v1023
      %v1095 = vadd.f32 %v944, %v1025
      %v1096 = vadd.f32 %v945, %v1027
      %v1097 = vadd.f32 %v946, %v1029
      %v1098 = vadd.f32 %v947, %v1031
      %v1099 = vadd.f32 %v948, %v1033
      %v1100 = vadd.f32 %v949, %v1035
      %v1101 = vadd.f32 %v950, %v1037
      %v1102 = vadd.f32 %v951, %v1039
      %v1103 = vadd.f32 %v952, %v1041
      %v1104 = vadd.f32 %v953, %v1043
      %v1105 = vadd.f32 %v954, %v1045
      %v1106 = vadd.f32 %v955, %v1047
      %v1107 = vadd.f32 %v956, %v1049
      %v1108 = vadd.f32 %v957, %v1051
      %v1109 = vadd.f32 %v958, %v1053
      %v1110 = vadd.f32 %v959, %v1055
      %v1111 = vadd.f32 %v960, %v1057
      %v1112 = vadd.f32 %v961, %v1059
      %v1113 = vadd.f32 %v962, %v1061
      %v1114 = vadd.f32 %v963, %v1063
      %v1115 = vadd.f32 %v964, %v1065
      %v1116 = vadd.f32 %v965, %v1067
      %v1117 = vadd.f32 %v966, %v1069
      %v1118 = vlaneseq
      %v1119 = vshrl.u32 %v1118, 7
      %v1120 = vsub.s32 5, %v1119
      %v1121 = vrot.slane %v557, %v1120
      %v1122 = vmul.f32 %v524, %v1121
      %v1123 = vmul.f32 %v525, %v1121
      %v1124 = vmul.f32 %v526, %v1121
      %v1125 = vmul.f32 %v527, %v1121
      %v1126 = vmul.f32 %v528, %v1121
      %v1127 = vmul.f32 %v529, %v1121
      %v1128 = vmul.f32 %v530, %v1121
      %v1129 = vmul.f32 %v531, %v1121
      %v1130 = vmul.f32 %v532, %v1121
      %v1131 = vmul.f32 %v533, %v1121
      %v1132 = vmul.f32 %v534, %v1121
      %v1133 = vmul.f32 %v535, %v1121
      %v1134 = vmul.f32 %v536, %v1121
      %v1135 = vmul.f32 %v537, %v1121
      %v1136 = vmul.f32 %v538, %v1121
      %v1137 = vmul.f32 %v539, %v1121
      %v1138 = vmul.f32 %v540, %v1121
      %v1139 = vmul.f32 %v541, %v1121
      %v1140 = vmul.f32 %v542, %v1121
      %v1141 = vmul.f32 %v543, %v1121
      %v1142 = vmul.f32 %v544, %v1121
      %v1143 = vmul.f32 %v551, %v1121
      %v1144 = vmul.f32 %v552, %v1121
      %v1145 = vmul.f32 %v553, %v1121
      %v1146 = vmul.f32 %v554, %v1121
      %v1172 = vrot.slane %v1122, 2
      %v1173 = vrot.slane %v1123, 2
      %v1174 = vsel %vm817, %v1172, %v1173
      %v1175 = vrot.slane %v1124, 2
      %v1176 = vsel %vm817, %v1173, %v1175
      %v1177 = vrot.slane %v1125, 2
      %v1178 = vsel %vm817, %v1175, %v1177
      %v1179 = vrot.slane %v1126, 2
      %v1180 = vsel %vm817, %v1177, %v1179
      %v1181 = vrot.slane %v1127, 2
      %v1182 = vsel %vm817, %v1179, %v1181
      %v1183 = vrot.slane %v1128, 2
      %v1184 = vsel %vm817, %v1181, %v1183
      %v1185 = vrot.slane %v1129, 2
      %v1186 = vsel %vm817, %v1183, %v1185
      %v1187 = vrot.slane %v1130, 2
      %v1188 = vsel %vm817, %v1185, %v1187
      %v1189 = vrot.slane %v1131, 2
      %v1190 = vsel %vm817, %v1187, %v1189
      %v1191 = vrot.slane %v1132, 2
      %v1192 = vsel %vm817, %v1189, %v1191
      %v1193 = vrot.slane %v1133, 2
      %v1194 = vsel %vm817, %v1191, %v1193
      %v1195 = vrot.slane %v1134, 2
      %v1196 = vsel %vm817, %v1193, %v1195
      %v1197 = vrot.slane %v1135, 2
      %v1198 = vsel %vm817, %v1195, %v1197
      %v1199 = vrot.slane %v1136, 2
      %v1200 = vsel %vm817, %v1197, %v1199
      %v1201 = vrot.slane %v1137, 2
      %v1202 = vsel %vm817, %v1199, %v1201
      %v1203 = vrot.slane %v1138, 2
      %v1204 = vsel %vm817, %v1201, %v1203
      %v1205 = vrot.slane %v1139, 2
      %v1206 = vsel %vm817, %v1203, %v1205
      %v1207 = vrot.slane %v1140, 2
      %v1208 = vsel %vm817, %v1205, %v1207
      %v1209 = vrot.slane %v1141, 2
      %v1210 = vsel %vm817, %v1207, %v1209
      %v1211 = vrot.slane %v1142, 2
      %v1212 = vsel %vm817, %v1209, %v1211
      %v1213 = vrot.slane %v1143, 2
      %v1214 = vsel %vm817, %v1211, %v1213
      %v1215 = vrot.slane %v1144, 2
      %v1216 = vsel %vm817, %v1213, %v1215
      %v1217 = vrot.slane %v1145, 2
      %v1218 = vsel %vm817, %v1215, %v1217
      %v1219 = vrot.slane %v1146, 2
      %v1220 = vsel %vm817, %v1217, %v1219
      %v1245 = vadd.f32 %v1094, %v1174
      %v1246 = vadd.f32 %v1095, %v1176
      %v1247 = vadd.f32 %v1096, %v1178
      %v1248 = vadd.f32 %v1097, %v1180
      %v1249 = vadd.f32 %v1098, %v1182
      %v1250 = vadd.f32 %v1099, %v1184
      %v1251 = vadd.f32 %v1100, %v1186
      %v1252 = vadd.f32 %v1101, %v1188
      %v1253 = vadd.f32 %v1102, %v1190
      %v1254 = vadd.f32 %v1103, %v1192
      %v1255 = vadd.f32 %v1104, %v1194
      %v1256 = vadd.f32 %v1105, %v1196
      %v1257 = vadd.f32 %v1106, %v1198
      %v1258 = vadd.f32 %v1107, %v1200
      %v1259 = vadd.f32 %v1108, %v1202
      %v1260 = vadd.f32 %v1109, %v1204
      %v1261 = vadd.f32 %v1110, %v1206
      %v1262 = vadd.f32 %v1111, %v1208
      %v1263 = vadd.f32 %v1112, %v1210
      %v1264 = vadd.f32 %v1113, %v1212
      %v1265 = vadd.f32 %v1114, %v1214
      %v1266 = vadd.f32 %v1115, %v1216
      %v1267 = vadd.f32 %v1116, %v1218
      %v1268 = vadd.f32 %v1117, %v1220
      %v1269 = vlaneseq
      %v1270 = vshrl.u32 %v1269, 7
      %v1271 = vsub.s32 6, %v1270
      %v1272 = vrot.slane %v557, %v1271
      %v1273 = vmul.f32 %v527, %v1272
      %v1274 = vmul.f32 %v528, %v1272
      %v1275 = vmul.f32 %v529, %v1272
      %v1276 = vmul.f32 %v530, %v1272
      %v1277 = vmul.f32 %v531, %v1272
      %v1278 = vmul.f32 %v532, %v1272
      %v1279 = vmul.f32 %v533, %v1272
      %v1280 = vmul.f32 %v534, %v1272
      %v1281 = vmul.f32 %v535, %v1272
      %v1282 = vmul.f32 %v536, %v1272
      %v1283 = vmul.f32 %v537, %v1272
      %v1284 = vmul.f32 %v538, %v1272
      %v1285 = vmul.f32 %v539, %v1272
      %v1286 = vmul.f32 %v540, %v1272
      %v1287 = vmul.f32 %v541, %v1272
      %v1288 = vmul.f32 %v542, %v1272
      %v1289 = vmul.f32 %v543, %v1272
      %v1290 = vmul.f32 %v544, %v1272
      %v1291 = vmul.f32 %v551, %v1272
      %v1292 = vmul.f32 %v552, %v1272
      %v1293 = vmul.f32 %v553, %v1272
      %v1294 = vmul.f32 %v554, %v1272
      %v1295 = vmul.f32 %v555, %v1272
      %v1296 = vmul.f32 %v556, %v1272
      %v1297 = vadd.f32 %v1245, %v1273
      %v1298 = vadd.f32 %v1246, %v1274
      %v1299 = vadd.f32 %v1247, %v1275
      %v1300 = vadd.f32 %v1248, %v1276
      %v1301 = vadd.f32 %v1249, %v1277
      %v1302 = vadd.f32 %v1250, %v1278
      %v1303 = vadd.f32 %v1251, %v1279
      %v1304 = vadd.f32 %v1252, %v1280
      %v1305 = vadd.f32 %v1253, %v1281
      %v1306 = vadd.f32 %v1254, %v1282
      %v1307 = vadd.f32 %v1255, %v1283
      %v1308 = vadd.f32 %v1256, %v1284
      %v1309 = vadd.f32 %v1257, %v1285
      %v1310 = vadd.f32 %v1258, %v1286
      %v1311 = vadd.f32 %v1259, %v1287
      %v1312 = vadd.f32 %v1260, %v1288
      %v1313 = vadd.f32 %v1261, %v1289
      %v1314 = vadd.f32 %v1262, %v1290
      %v1315 = vadd.f32 %v1263, %v1291
      %v1316 = vadd.f32 %v1264, %v1292
      %v1317 = vadd.f32 %v1265, %v1293
      %v1318 = vadd.f32 %v1266, %v1294
      %v1319 = vadd.f32 %v1267, %v1295
      %v1320 = vadd.f32 %v1268, %v1296
      %v1321 = vlaneseq
      %v1322 = vshrl.u32 %v1321, 7
      %v1323 = vsub.s32 7, %v1322
      %v1324 = vrot.slane %v557, %v1323
      %v1325 = vmul.f32 %v527, %v1324
      %v1326 = vmul.f32 %v528, %v1324
      %v1327 = vmul.f32 %v529, %v1324
      %v1328 = vmul.f32 %v530, %v1324
      %v1329 = vmul.f32 %v531, %v1324
      %v1330 = vmul.f32 %v532, %v1324
      %v1331 = vmul.f32 %v533, %v1324
      %v1332 = vmul.f32 %v534, %v1324
      %v1333 = vmul.f32 %v535, %v1324
      %v1334 = vmul.f32 %v536, %v1324
      %v1335 = vmul.f32 %v537, %v1324
      %v1336 = vmul.f32 %v538, %v1324
      %v1337 = vmul.f32 %v539, %v1324
      %v1338 = vmul.f32 %v540, %v1324
      %v1339 = vmul.f32 %v541, %v1324
      %v1340 = vmul.f32 %v542, %v1324
      %v1341 = vmul.f32 %v543, %v1324
      %v1342 = vmul.f32 %v544, %v1324
      %v1343 = vmul.f32 %v551, %v1324
      %v1344 = vmul.f32 %v552, %v1324
      %v1345 = vmul.f32 %v553, %v1324
      %v1346 = vmul.f32 %v554, %v1324
      %v1347 = vmul.f32 %v555, %v1324
      %v1348 = vmul.f32 %v556, %v1324
      %v1349 = vmul.f32 %v1324, 0.0
      %v1375 = vrot.slane %v1325, 1
      %v1376 = vrot.slane %v1326, 1
      %v1377 = vsel %vm665, %v1375, %v1376
      %v1378 = vrot.slane %v1327, 1
      %v1379 = vsel %vm665, %v1376, %v1378
      %v1380 = vrot.slane %v1328, 1
      %v1381 = vsel %vm665, %v1378, %v1380
      %v1382 = vrot.slane %v1329, 1
      %v1383 = vsel %vm665, %v1380, %v1382
      %v1384 = vrot.slane %v1330, 1
      %v1385 = vsel %vm665, %v1382, %v1384
      %v1386 = vrot.slane %v1331, 1
      %v1387 = vsel %vm665, %v1384, %v1386
      %v1388 = vrot.slane %v1332, 1
      %v1389 = vsel %vm665, %v1386, %v1388
      %v1390 = vrot.slane %v1333, 1
      %v1391 = vsel %vm665, %v1388, %v1390
      %v1392 = vrot.slane %v1334, 1
      %v1393 = vsel %vm665, %v1390, %v1392
      %v1394 = vrot.slane %v1335, 1
      %v1395 = vsel %vm665, %v1392, %v1394
      %v1396 = vrot.slane %v1336, 1
      %v1397 = vsel %vm665, %v1394, %v1396
      %v1398 = vrot.slane %v1337, 1
      %v1399 = vsel %vm665, %v1396, %v1398
      %v1400 = vrot.slane %v1338, 1
      %v1401 = vsel %vm665, %v1398, %v1400
      %v1402 = vrot.slane %v1339, 1
      %v1403 = vsel %vm665, %v1400, %v1402
      %v1404 = vrot.slane %v1340, 1
      %v1405 = vsel %vm665, %v1402, %v1404
      %v1406 = vrot.slane %v1341, 1
      %v1407 = vsel %vm665, %v1404, %v1406
      %v1408 = vrot.slane %v1342, 1
      %v1409 = vsel %vm665, %v1406, %v1408
      %v1410 = vrot.slane %v1343, 1
      %v1411 = vsel %vm665, %v1408, %v1410
      %v1412 = vrot.slane %v1344, 1
      %v1413 = vsel %vm665, %v1410, %v1412
      %v1414 = vrot.slane %v1345, 1
      %v1415 = vsel %vm665, %v1412, %v1414
      %v1416 = vrot.slane %v1346, 1
      %v1417 = vsel %vm665, %v1414, %v1416
      %v1418 = vrot.slane %v1347, 1
      %v1419 = vsel %vm665, %v1416, %v1418
      %v1420 = vrot.slane %v1348, 1
      %v1421 = vsel %vm665, %v1418, %v1420
      %v1422 = vrot.slane %v1349, 1
      %v1423 = vsel %vm665, %v1420, %v1422
      %v1448 = vadd.f32 %v1297, %v1377
      %v1449 = vadd.f32 %v1298, %v1379
      %v1450 = vadd.f32 %v1299, %v1381
      %v1451 = vadd.f32 %v1300, %v1383
      %v1452 = vadd.f32 %v1301, %v1385
      %v1453 = vadd.f32 %v1302, %v1387
      %v1454 = vadd.f32 %v1303, %v1389
      %v1455 = vadd.f32 %v1304, %v1391
      %v1456 = vadd.f32 %v1305, %v1393
      %v1457 = vadd.f32 %v1306, %v1395
      %v1458 = vadd.f32 %v1307, %v1397
      %v1459 = vadd.f32 %v1308, %v1399
      %v1460 = vadd.f32 %v1309, %v1401
      %v1461 = vadd.f32 %v1310, %v1403
      %v1462 = vadd.f32 %v1311, %v1405
      %v1463 = vadd.f32 %v1312, %v1407
      %v1464 = vadd.f32 %v1313, %v1409
      %v1465 = vadd.f32 %v1314, %v1411
      %v1466 = vadd.f32 %v1315, %v1413
      %v1467 = vadd.f32 %v1316, %v1415
      %v1468 = vadd.f32 %v1317, %v1417
      %v1469 = vadd.f32 %v1318, %v1419
      %v1470 = vadd.f32 %v1319, %v1421
      %v1471 = vadd.f32 %v1320, %v1423
      %v1472 = vlaneseq
      %v1473 = vshrl.u32 %v1472, 7
      %v1474 = vsub.s32 0, %v1473
      %v1475 = vrot.slane %v558, %v1474
      %v1476 = vmul.f32 %v527, %v1475
      %v1477 = vmul.f32 %v528, %v1475
      %v1478 = vmul.f32 %v529, %v1475
      %v1479 = vmul.f32 %v530, %v1475
      %v1480 = vmul.f32 %v531, %v1475
      %v1481 = vmul.f32 %v532, %v1475
      %v1482 = vmul.f32 %v533, %v1475
      %v1483 = vmul.f32 %v534, %v1475
      %v1484 = vmul.f32 %v535, %v1475
      %v1485 = vmul.f32 %v536, %v1475
      %v1486 = vmul.f32 %v537, %v1475
      %v1487 = vmul.f32 %v538, %v1475
      %v1488 = vmul.f32 %v539, %v1475
      %v1489 = vmul.f32 %v540, %v1475
      %v1490 = vmul.f32 %v541, %v1475
      %v1491 = vmul.f32 %v542, %v1475
      %v1492 = vmul.f32 %v543, %v1475
      %v1493 = vmul.f32 %v544, %v1475
      %v1494 = vmul.f32 %v551, %v1475
      %v1495 = vmul.f32 %v552, %v1475
      %v1496 = vmul.f32 %v553, %v1475
      %v1497 = vmul.f32 %v554, %v1475
      %v1498 = vmul.f32 %v555, %v1475
      %v1499 = vmul.f32 %v556, %v1475
      %v1500 = vmul.f32 %v1475, 0.0
      %v1526 = vrot.slane %v1476, 2
      %v1527 = vrot.slane %v1477, 2
      %v1528 = vsel %vm817, %v1526, %v1527
      %v1529 = vrot.slane %v1478, 2
      %v1530 = vsel %vm817, %v1527, %v1529
      %v1531 = vrot.slane %v1479, 2
      %v1532 = vsel %vm817, %v1529, %v1531
      %v1533 = vrot.slane %v1480, 2
      %v1534 = vsel %vm817, %v1531, %v1533
      %v1535 = vrot.slane %v1481, 2
      %v1536 = vsel %vm817, %v1533, %v1535
      %v1537 = vrot.slane %v1482, 2
      %v1538 = vsel %vm817, %v1535, %v1537
      %v1539 = vrot.slane %v1483, 2
      %v1540 = vsel %vm817, %v1537, %v1539
      %v1541 = vrot.slane %v1484, 2
      %v1542 = vsel %vm817, %v1539, %v1541
      %v1543 = vrot.slane %v1485, 2
      %v1544 = vsel %vm817, %v1541, %v1543
      %v1545 = vrot.slane %v1486, 2
      %v1546 = vsel %vm817, %v1543, %v1545
      %v1547 = vrot.slane %v1487, 2
      %v1548 = vsel %vm817, %v1545, %v1547
      %v1549 = vrot.slane %v1488, 2
      %v1550 = vsel %vm817, %v1547, %v1549
      %v1551 = vrot.slane %v1489, 2
      %v1552 = vsel %vm817, %v1549, %v1551
      %v1553 = vrot.slane %v1490, 2
      %v1554 = vsel %vm817, %v1551, %v1553
      %v1555 = vrot.slane %v1491, 2
      %v1556 = vsel %vm817, %v1553, %v1555
      %v1557 = vrot.slane %v1492, 2
      %v1558 = vsel %vm817, %v1555, %v1557
      %v1559 = vrot.slane %v1493, 2
      %v1560 = vsel %vm817, %v1557, %v1559
      %v1561 = vrot.slane %v1494, 2
      %v1562 = vsel %vm817, %v1559, %v1561
      %v1563 = vrot.slane %v1495, 2
      %v1564 = vsel %vm817, %v1561, %v1563
      %v1565 = vrot.slane %v1496, 2
      %v1566 = vsel %vm817, %v1563, %v1565
      %v1567 = vrot.slane %v1497, 2
      %v1568 = vsel %vm817, %v1565, %v1567
      %v1569 = vrot.slane %v1498, 2
      %v1570 = vsel %vm817, %v1567, %v1569
      %v1571 = vrot.slane %v1499, 2
      %v1572 = vsel %vm817, %v1569, %v1571
      %v1573 = vrot.slane %v1500, 2
      %v1574 = vsel %vm817, %v1571, %v1573
      %v1599 = vadd.f32 %v1448, %v1528
      %v1600 = vadd.f32 %v1449, %v1530
      %v1601 = vadd.f32 %v1450, %v1532
      %v1602 = vadd.f32 %v1451, %v1534
      %v1603 = vadd.f32 %v1452, %v1536
      %v1604 = vadd.f32 %v1453, %v1538
      %v1605 = vadd.f32 %v1454, %v1540
      %v1606 = vadd.f32 %v1455, %v1542
      %v1607 = vadd.f32 %v1456, %v1544
      %v1608 = vadd.f32 %v1457, %v1546
      %v1609 = vadd.f32 %v1458, %v1548
      %v1610 = vadd.f32 %v1459, %v1550
      %v1611 = vadd.f32 %v1460, %v1552
      %v1612 = vadd.f32 %v1461, %v1554
      %v1613 = vadd.f32 %v1462, %v1556
      %v1614 = vadd.f32 %v1463, %v1558
      %v1615 = vadd.f32 %v1464, %v1560
      %v1616 = vadd.f32 %v1465, %v1562
      %v1617 = vadd.f32 %v1466, %v1564
      %v1618 = vadd.f32 %v1467, %v1566
      %v1619 = vadd.f32 %v1468, %v1568
      %v1620 = vadd.f32 %v1469, %v1570
      %v1621 = vadd.f32 %v1470, %v1572
      %v1622 = vadd.f32 %v1471, %v1574
      %v1623 = vld [vmem:[%s4] sm:$0x1]
      %v1625 = vlaneseq
      %v1626 = vshrl.u32 %v1625, 7
      %v1627 = vsub.s32 0, %v1626
      %v1628 = vrot.slane %v1623, %v1627
      %v1630 = vadd.f32 %v1599, %v1628
      %v1631 = vadd.f32 %v1600, %v1628
      %v1632 = vadd.f32 %v1601, %v1628
      %v1633 = vadd.f32 %v1602, %v1628
      %v1634 = vadd.f32 %v1603, %v1628
      %v1635 = vadd.f32 %v1604, %v1628
      %v1636 = vadd.f32 %v1605, %v1628
      %v1637 = vadd.f32 %v1606, %v1628
      %v1638 = vadd.f32 %v1607, %v1628
      %v1639 = vadd.f32 %v1608, %v1628
      %v1640 = vadd.f32 %v1609, %v1628
      %v1641 = vadd.f32 %v1610, %v1628
      %v1642 = vadd.f32 %v1611, %v1628
      %v1643 = vadd.f32 %v1612, %v1628
      %v1644 = vadd.f32 %v1613, %v1628
      %v1645 = vadd.f32 %v1614, %v1628
      %v1646 = vadd.f32 %v1615, %v1628
      %v1647 = vadd.f32 %v1616, %v1628
      %v1648 = vadd.f32 %v1617, %v1628
      %v1649 = vadd.f32 %v1618, %v1628
      %v1650 = vadd.f32 %v1619, %v1628
      %v1651 = vadd.f32 %v1620, %v1628
      %v1652 = vadd.f32 %v1621, %v1628
      %v1653 = vadd.f32 %v1622, %v1628
      %v1654 = vmax.f32 %v1630, 0.0
      %v1655 = vmax.f32 %v1631, 0.0
      %v1656 = vmax.f32 %v1632, 0.0
      %v1657 = vmax.f32 %v1633, 0.0
      %v1658 = vmax.f32 %v1634, 0.0
      %v1659 = vmax.f32 %v1635, 0.0
      %v1660 = vmax.f32 %v1636, 0.0
      %v1661 = vmax.f32 %v1637, 0.0
      %v1662 = vmax.f32 %v1638, 0.0
      %v1663 = vmax.f32 %v1639, 0.0
      %v1664 = vmax.f32 %v1640, 0.0
      %v1665 = vmax.f32 %v1641, 0.0
      %v1666 = vmax.f32 %v1642, 0.0
      %v1667 = vmax.f32 %v1643, 0.0
      %v1668 = vmax.f32 %v1644, 0.0
      %v1669 = vmax.f32 %v1645, 0.0
      %v1670 = vmax.f32 %v1646, 0.0
      %v1671 = vmax.f32 %v1647, 0.0
      %v1672 = vmax.f32 %v1648, 0.0
      %v1673 = vmax.f32 %v1649, 0.0
      %v1674 = vmax.f32 %v1650, 0.0
      %v1675 = vmax.f32 %v1651, 0.0
      %v1676 = vmax.f32 %v1652, 0.0
      %v1677 = vmax.f32 %v1653, 0.0
      %v1678 = vld [vmem:[%s484] sm:$0x1]
      %v1680 = vlaneseq
      %v1681 = vshrl.u32 %v1680, 7
      %v1682 = vsub.s32 0, %v1681
      %v1683 = vrot.slane %v1678, %v1682
      %v1685 = vmul.f32 %v524, %v1683
      %v1686 = vmul.f32 %v525, %v1683
      %v1687 = vmul.f32 %v526, %v1683
      %v1688 = vmul.f32 %v527, %v1683
      %v1689 = vmul.f32 %v528, %v1683
      %v1690 = vmul.f32 %v529, %v1683
      %v1691 = vmul.f32 %v530, %v1683
      %v1692 = vmul.f32 %v531, %v1683
      %v1693 = vmul.f32 %v532, %v1683
      %v1694 = vmul.f32 %v533, %v1683
      %v1695 = vmul.f32 %v534, %v1683
      %v1696 = vmul.f32 %v535, %v1683
      %v1697 = vmul.f32 %v536, %v1683
      %v1698 = vmul.f32 %v537, %v1683
      %v1699 = vmul.f32 %v538, %v1683
      %v1700 = vmul.f32 %v539, %v1683
      %v1701 = vmul.f32 %v540, %v1683
      %v1702 = vmul.f32 %v541, %v1683
      %v1703 = vmul.f32 %v542, %v1683
      %v1704 = vmul.f32 %v543, %v1683
      %v1705 = vmul.f32 %v544, %v1683
      %v1706 = vmul.f32 %v551, %v1683
      %v1707 = vmul.f32 %v552, %v1683
      %v1708 = vmul.f32 %v553, %v1683
      %v1709 = vmul.f32 %v554, %v1683
      %v1710 = vpack.c.bf16 %v1655, %v1654
      %v1711 = vpack.c.bf16 %v1657, %v1656
      %v1712 = vpack.c.bf16 %v1659, %v1658
      %v1713 = vpack.c.bf16 %v1661, %v1660
      %v1714 = vpack.c.bf16 %v1663, %v1662
      %v1715 = vpack.c.bf16 %v1665, %v1664
      %v1716 = vpack.c.bf16 %v1667, %v1666
      %v1717 = vpack.c.bf16 %v1669, %v1668
      %v1718 = vpack.c.bf16 %v1671, %v1670
      %v1719 = vpack.c.bf16 %v1673, %v1672
      %v1720 = vpack.c.bf16 %v1675, %v1674
      %v1721 = vpack.c.bf16 %v1677, %v1676
      %v1722 = vld [vmem:[%s5] sm:$0xf]
      %v1723 = vld [vmem:[%s5 + $0x4] sm:$0xf]
      %v1724 = vld [vmem:[%s5 + $0x8] sm:$0xf]
      %v1725 = vld [vmem:[%s5 + $0xc] sm:$0xf]
      %v1726 = vld [vmem:[%s5 + $0x10] sm:$0xf]
      %v1727 = vld [vmem:[%s5 + $0x14] sm:$0xf]
      %v1728 = vld [vmem:[%s5 + $0x18] sm:$0xf]
      %v1729 = vld [vmem:[%s5 + $0x1c] sm:$0xf]
      %v1730 = vld [vmem:[%s5 + $0x20] sm:$0xf]
      %v1731 = vld [vmem:[%s5 + $0x24] sm:$0xf]
      %v1732 = vld [vmem:[%s5 + $0x28] sm:$0xf]
      %v1733 = vld [vmem:[%s5 + $0x2c] sm:$0xf]
      %v1734 = vld [vmem:[%s5 + $0x30] sm:$0xf]
      %v1735 = vld [vmem:[%s5 + $0x34] sm:$0xf]
      %v1736 = vld [vmem:[%s5 + $0x38] sm:$0xf]
      %v1737 = vld [vmem:[%s5 + $0x3c] sm:$0xf]
      %v1738 = vpack.c.bf16 %v1686, %v1685
      %v1739 = vpack.c.bf16 %v1688, %v1687
      %v1740 = vpack.c.bf16 %v1690, %v1689
      %v1741 = vpack.c.bf16 %v1692, %v1691
      %v1742 = vpack.c.bf16 %v1694, %v1693
      %v1743 = vpack.c.bf16 %v1696, %v1695
      %v1744 = vpack.c.bf16 %v1698, %v1697
      %v1745 = vpack.c.bf16 %v1700, %v1699
      %v1746 = vpack.c.bf16 %v1702, %v1701
      %v1747 = vpack.c.bf16 %v1704, %v1703
      %v1748 = vpack.c.bf16 %v1706, %v1705
      %v1749 = vpack.c.bf16 %v1708, %v1707
      %v1750 = vpack.c.bf16 %v1709, %v1709
      %v1751 = vld [vmem:[%s6] sm:$0xf]
      %v1752 = vld [vmem:[%s6 + $0x4] sm:$0xf]
      %v1753 = vld [vmem:[%s6 + $0x8] sm:$0xf]
      %v1754 = vld [vmem:[%s6 + $0xc] sm:$0xf]
      %v1755 = vld [vmem:[%s6 + $0x10] sm:$0xf]
      %v1756 = vld [vmem:[%s6 + $0x14] sm:$0xf]
      %v1757 = vld [vmem:[%s6 + $0x18] sm:$0xf]
      %v1758 = vld [vmem:[%s6 + $0x1c] sm:$0xf]
      %v1759 = vld [vmem:[%s6 + $0x20] sm:$0xf]
      %v1760 = vld [vmem:[%s6 + $0x24] sm:$0xf]
      %v1761 = vld [vmem:[%s6 + $0x28] sm:$0xf]
      %v1762 = vld [vmem:[%s6 + $0x2c] sm:$0xf]
      %v1763 = vld [vmem:[%s6 + $0x30] sm:$0xf]
      %v1764 = vld [vmem:[%s6 + $0x34] sm:$0xf]
      %v1765 = vld [vmem:[%s6 + $0x38] sm:$0xf]
      %v1766 = vld [vmem:[%s6 + $0x3c] sm:$0xf]
      %vm1767 = vsmask.f32 7424
      %v1769 = vshrl.u32 %v1738, 16
      %v1771 = vshll.u32 %v1738, 16
      %v1773 = vrot.slane %v1771, 1
      %v1774 = vor.u32 %v1769, %v1773
      %v1776 = vshll.u32 %v1739, 16
      %v1778 = vrot.slane %v1776, 1
      %v1779 = vsel %vm1767, %v1774, %v1778
      %v1780 = vshrl.u32 %v1739, 16
      %v1782 = vor.u32 %v1780, %v1778
      %v1784 = vshll.u32 %v1740, 16
      %v1786 = vrot.slane %v1784, 1
      %v1787 = vsel %vm1767, %v1782, %v1786
      %v1788 = vshrl.u32 %v1740, 16
      %v1790 = vor.u32 %v1788, %v1786
      %v1792 = vshll.u32 %v1741, 16
      %v1794 = vrot.slane %v1792, 1
      %v1795 = vsel %vm1767, %v1790, %v1794
      %v1796 = vshrl.u32 %v1741, 16
      %v1798 = vor.u32 %v1796, %v1794
      %v1800 = vshll.u32 %v1742, 16
      %v1802 = vrot.slane %v1800, 1
      %v1803 = vsel %vm1767, %v1798, %v1802
      %v1804 = vshrl.u32 %v1742, 16
      %v1806 = vor.u32 %v1804, %v1802
      %v1808 = vshll.u32 %v1743, 16
      %v1810 = vrot.slane %v1808, 1
      %v1811 = vsel %vm1767, %v1806, %v1810
      %v1812 = vshrl.u32 %v1743, 16
      %v1814 = vor.u32 %v1812, %v1810
      %v1816 = vshll.u32 %v1744, 16
      %v1818 = vrot.slane %v1816, 1
      %v1819 = vsel %vm1767, %v1814, %v1818
      %v1820 = vshrl.u32 %v1744, 16
      %v1822 = vor.u32 %v1820, %v1818
      %v1824 = vshll.u32 %v1745, 16
      %v1826 = vrot.slane %v1824, 1
      %v1827 = vsel %vm1767, %v1822, %v1826
      %v1828 = vshrl.u32 %v1745, 16
      %v1830 = vor.u32 %v1828, %v1826
      %v1832 = vshll.u32 %v1746, 16
      %v1834 = vrot.slane %v1832, 1
      %v1835 = vsel %vm1767, %v1830, %v1834
      %v1836 = vshrl.u32 %v1746, 16
      %v1838 = vor.u32 %v1836, %v1834
      %v1840 = vshll.u32 %v1747, 16
      %v1842 = vrot.slane %v1840, 1
      %v1843 = vsel %vm1767, %v1838, %v1842
      %v1844 = vshrl.u32 %v1747, 16
      %v1846 = vor.u32 %v1844, %v1842
      %v1848 = vshll.u32 %v1748, 16
      %v1850 = vrot.slane %v1848, 1
      %v1851 = vsel %vm1767, %v1846, %v1850
      %v1852 = vshrl.u32 %v1748, 16
      %v1854 = vor.u32 %v1852, %v1850
      %v1856 = vshll.u32 %v1749, 16
      %v1858 = vrot.slane %v1856, 1
      %v1859 = vsel %vm1767, %v1854, %v1858
      %v1860 = vshrl.u32 %v1749, 16
      %v1862 = vor.u32 %v1860, %v1858
      %v1864 = vshll.u32 %v1750, 16
      %v1866 = vrot.slane %v1864, 1
      %v1867 = vsel %vm1767, %v1862, %v1866
      %v1896 = vunpack.c.l.b16 %v1751
      %v1897 = vunpack.c.l.b16 %v1752
      %v1898 = vunpack.c.l.b16 %v1753
      %v1899 = vunpack.c.l.b16 %v1754
      %v1900 = vunpack.c.l.b16 %v1755
      %v1901 = vunpack.c.l.b16 %v1756
      %v1902 = vunpack.c.l.b16 %v1757
      %v1903 = vunpack.c.l.b16 %v1758
      %v1904 = vunpack.c.l.b16 %v1759
      %v1905 = vunpack.c.l.b16 %v1760
      %v1906 = vunpack.c.l.b16 %v1761
      %v1907 = vunpack.c.l.b16 %v1762
      %v1908 = vunpack.c.l.b16 %v1763
      %v1909 = vunpack.c.l.b16 %v1764
      %v1910 = vunpack.c.l.b16 %v1765
      %v1911 = vunpack.c.l.b16 %v1766
      %v1912 = vpack.c.b16 %v1897, %v1896
      %v1913 = vpack.c.b16 %v1899, %v1898
      %v1914 = vpack.c.b16 %v1901, %v1900
      %v1915 = vpack.c.b16 %v1903, %v1902
      %v1916 = vpack.c.b16 %v1905, %v1904
      %v1917 = vpack.c.b16 %v1907, %v1906
      %v1918 = vpack.c.b16 %v1909, %v1908
      %v1919 = vpack.c.b16 %v1911, %v1910
      %1928 = vmatprep.subr.bf16.mxu0 0
      %1929 = vmatpush1.bf16.msra.mxu0 %v1912
      %1930 = vmatprep.subr.bf16.mxu0 0
      %1931 = vmatpush1.bf16.msra.mxu0 %v1913
      %1932 = vmatprep.subr.bf16.mxu0 0
      %1933 = vmatpush1.bf16.msra.mxu0 %v1914
      %1934 = vmatprep.subr.bf16.mxu0 0
      %1935 = vmatpush1.bf16.msra.mxu0 %v1915
      %1936 = vmatprep.subr.bf16.mxu0 0
      %1937 = vmatpush1.bf16.msra.mxu0 %v1916
      %1938 = vmatprep.subr.bf16.mxu0 0
      %1939 = vmatpush1.bf16.msra.mxu0 %v1917
      %1940 = vmatprep.subr.bf16.mxu0 0
      %1941 = vmatpush1.bf16.msra.mxu0 %v1918
      %1942 = vmatprep.subr.bf16.mxu0 0
      %1943 = vmatpush1.bf16.msra.mxu0 %v1919
      %1944 = vmatprep.subr.bf16.mxu0 0
      %1945 = vmatpush1.bf16.msra.mxu0 0
      %1946 = vmatprep.subr.bf16.mxu0 0
      %1947 = vmatpush1.bf16.msra.mxu0 0
      %1948 = vmatprep.subr.bf16.mxu0 0
      %1949 = vmatpush1.bf16.msra.mxu0 0
      %1950 = vmatprep.subr.bf16.mxu0 0
      %1951 = vmatpush1.bf16.msra.mxu0 0
      %1952 = vmatprep.subr.bf16.mxu0 0
      %1953 = vmatpush1.bf16.msra.mxu0 0
      %1954 = vmatprep.subr.bf16.mxu0 0
      %1955 = vmatpush1.bf16.msra.mxu0 0
      %1956 = vmatprep.subr.bf16.mxu0 0
      %1957 = vmatpush1.bf16.msra.mxu0 0
      %1958 = vmatprep.subr.bf16.mxu0 0
      %1959 = vmatpush1.bf16.msra.mxu0 0
      %1960 = vmatprep.mubr.bf16.mxu0 0
      %1961 = vmatmul.mubr.bf16.gmra.mrb[0].mxu0 %v1779
      %v1962 = vpop.f32.mrb[0].mxu0
      %v1963 = vadd.f32 0.0, %v1962
      %v1964 = vpop.f32.mrb[0].mxu0
      %v1965 = vpop.f32.mrb[0].mxu0
      %v1966 = vadd.f32 0.0, %v1965
      %v1967 = vpop.f32.mrb[0].mxu0
      %1968 = vmatprep.mubr.bf16.mxu0 0
      %1969 = vmatmul.mubr.bf16.gmra.mrb[0].mxu0 %v1787
      %v1970 = vpop.f32.mrb[0].mxu0
      %v1971 = vadd.f32 0.0, %v1970
      %v1972 = vpop.f32.mrb[0].mxu0
      %v1973 = vpop.f32.mrb[0].mxu0
      %v1974 = vadd.f32 0.0, %v1973
      %v1975 = vpop.f32.mrb[0].mxu0
      %1976 = vmatprep.mubr.bf16.mxu0 0
      %1977 = vmatmul.mubr.bf16.gmra.mrb[0].mxu0 %v1795
      %v1978 = vpop.f32.mrb[0].mxu0
      %v1979 = vadd.f32 0.0, %v1978
      %v1980 = vpop.f32.mrb[0].mxu0
      %v1981 = vpop.f32.mrb[0].mxu0
      %v1982 = vadd.f32 0.0, %v1981
      %v1983 = vpop.f32.mrb[0].mxu0
      %1984 = vmatprep.mubr.bf16.mxu0 0
      %1985 = vmatmul.mubr.bf16.gmra.mrb[0].mxu0 %v1803
      %v1986 = vpop.f32.mrb[0].mxu0
      %v1987 = vadd.f32 0.0, %v1986
      %v1988 = vpop.f32.mrb[0].mxu0
      %v1989 = vpop.f32.mrb[0].mxu0
      %v1990 = vadd.f32 0.0, %v1989
      %v1991 = vpop.f32.mrb[0].mxu0
      %1992 = vmatprep.mubr.bf16.mxu0 0
      %1993 = vmatmul.mubr.bf16.gmra.mrb[0].mxu0 %v1811
      %v1994 = vpop.f32.mrb[0].mxu0
      %v1995 = vadd.f32 0.0, %v1994
      %v1996 = vpop.f32.mrb[0].mxu0
      %v1997 = vpop.f32.mrb[0].mxu0
      %v1998 = vadd.f32 0.0, %v1997
      %v1999 = vpop.f32.mrb[0].mxu0
      %2000 = vmatprep.mubr.bf16.mxu0 0
      %2001 = vmatmul.mubr.bf16.gmra.mrb[0].mxu0 %v1819
      %v2002 = vpop.f32.mrb[0].mxu0
      %v2003 = vadd.f32 0.0, %v2002
      %v2004 = vpop.f32.mrb[0].mxu0
      %v2005 = vpop.f32.mrb[0].mxu0
      %v2006 = vadd.f32 0.0, %v2005
      %v2007 = vpop.f32.mrb[0].mxu0
      %2008 = vmatprep.mubr.bf16.mxu0 0
      %2009 = vmatmul.mubr.bf16.gmra.mrb[0].mxu0 %v1827
      %v2010 = vpop.f32.mrb[0].mxu0
      %v2011 = vadd.f32 0.0, %v2010
      %v2012 = vpop.f32.mrb[0].mxu0
      %v2013 = vpop.f32.mrb[0].mxu0
      %v2014 = vadd.f32 0.0, %v2013
      %v2015 = vpop.f32.mrb[0].mxu0
      %2016 = vmatprep.mubr.bf16.mxu0 0
      %2017 = vmatmul.mubr.bf16.gmra.mrb[0].mxu0 %v1835
      %v2018 = vpop.f32.mrb[0].mxu0
      %v2019 = vadd.f32 0.0, %v2018
      %v2020 = vpop.f32.mrb[0].mxu0
      %v2021 = vpop.f32.mrb[0].mxu0
      %v2022 = vadd.f32 0.0, %v2021
      %v2023 = vpop.f32.mrb[0].mxu0
      %2024 = vmatprep.mubr.bf16.mxu0 0
      %2025 = vmatmul.mubr.bf16.gmra.mrb[0].mxu0 %v1843
      %v2026 = vpop.f32.mrb[0].mxu0
      %v2027 = vadd.f32 0.0, %v2026
      %v2028 = vpop.f32.mrb[0].mxu0
      %v2029 = vpop.f32.mrb[0].mxu0
      %v2030 = vadd.f32 0.0, %v2029
      %v2031 = vpop.f32.mrb[0].mxu0
      %2032 = vmatprep.mubr.bf16.mxu0 0
      %2033 = vmatmul.mubr.bf16.gmra.mrb[0].mxu0 %v1851
      %v2034 = vpop.f32.mrb[0].mxu0
      %v2035 = vadd.f32 0.0, %v2034
      %v2036 = vpop.f32.mrb[0].mxu0
      %v2037 = vpop.f32.mrb[0].mxu0
      %v2038 = vadd.f32 0.0, %v2037
      %v2039 = vpop.f32.mrb[0].mxu0
      %2040 = vmatprep.mubr.bf16.mxu0 0
      %2041 = vmatmul.mubr.bf16.gmra.mrb[0].mxu0 %v1859
      %v2042 = vpop.f32.mrb[0].mxu0
      %v2043 = vadd.f32 0.0, %v2042
      %v2044 = vpop.f32.mrb[0].mxu0
      %v2045 = vpop.f32.mrb[0].mxu0
      %v2046 = vadd.f32 0.0, %v2045
      %v2047 = vpop.f32.mrb[0].mxu0
      %2048 = vmatprep.mubr.bf16.mxu0 0
      %2049 = vmatmul.mubr.bf16.gmra.mrb[0].mxu0 %v1867
      %v2050 = vpop.f32.mrb[0].mxu0
      %v2051 = vadd.f32 0.0, %v2050
      %v2052 = vpop.f32.mrb[0].mxu0
      %v2053 = vpop.f32.mrb[0].mxu0
      %v2054 = vadd.f32 0.0, %v2053
      %v2055 = vpop.f32.mrb[0].mxu0
      %2056 = vdwg.mxu0
      %v2073 = vunpack.c.l.b16 %v1722
      %v2074 = vunpack.c.l.b16 %v1723
      %v2075 = vunpack.c.l.b16 %v1724
      %v2076 = vunpack.c.l.b16 %v1725
      %v2077 = vunpack.c.l.b16 %v1726
      %v2078 = vunpack.c.l.b16 %v1727
      %v2079 = vunpack.c.l.b16 %v1728
      %v2080 = vunpack.c.l.b16 %v1729
      %v2081 = vunpack.c.l.b16 %v1730
      %v2082 = vunpack.c.l.b16 %v1731
      %v2083 = vunpack.c.l.b16 %v1732
      %v2084 = vunpack.c.l.b16 %v1733
      %v2085 = vunpack.c.l.b16 %v1734
      %v2086 = vunpack.c.l.b16 %v1735
      %v2087 = vunpack.c.l.b16 %v1736
      %v2088 = vunpack.c.l.b16 %v1737
      %v2089 = vpack.c.b16 %v2074, %v2073
      %v2090 = vpack.c.b16 %v2076, %v2075
      %v2091 = vpack.c.b16 %v2078, %v2077
      %v2092 = vpack.c.b16 %v2080, %v2079
      %v2093 = vpack.c.b16 %v2082, %v2081
      %v2094 = vpack.c.b16 %v2084, %v2083
      %v2095 = vpack.c.b16 %v2086, %v2085
      %v2096 = vpack.c.b16 %v2088, %v2087
      %2105 = vmatprep.subr.bf16.mxu0 0
      %2106 = vmatpush1.bf16.msra.mxu0 %v2089
      %2107 = vmatprep.subr.bf16.mxu0 0
      %2108 = vmatpush1.bf16.msra.mxu0 %v2090
      %2109 = vmatprep.subr.bf16.mxu0 0
      %2110 = vmatpush1.bf16.msra.mxu0 %v2091
      %2111 = vmatprep.subr.bf16.mxu0 0
      %2112 = vmatpush1.bf16.msra.mxu0 %v2092
      %2113 = vmatprep.subr.bf16.mxu0 0
      %2114 = vmatpush1.bf16.msra.mxu0 %v2093
      %2115 = vmatprep.subr.bf16.mxu0 0
      %2116 = vmatpush1.bf16.msra.mxu0 %v2094
      %2117 = vmatprep.subr.bf16.mxu0 0
      %2118 = vmatpush1.bf16.msra.mxu0 %v2095
      %2119 = vmatprep.subr.bf16.mxu0 0
      %2120 = vmatpush1.bf16.msra.mxu0 %v2096
      %2121 = vmatprep.subr.bf16.mxu0 0
      %2122 = vmatpush1.bf16.msra.mxu0 0
      %2123 = vmatprep.subr.bf16.mxu0 0
      %2124 = vmatpush1.bf16.msra.mxu0 0
      %2125 = vmatprep.subr.bf16.mxu0 0
      %2126 = vmatpush1.bf16.msra.mxu0 0
      %2127 = vmatprep.subr.bf16.mxu0 0
      %2128 = vmatpush1.bf16.msra.mxu0 0
      %2129 = vmatprep.subr.bf16.mxu0 0
      %2130 = vmatpush1.bf16.msra.mxu0 0
      %2131 = vmatprep.subr.bf16.mxu0 0
      %2132 = vmatpush1.bf16.msra.mxu0 0
      %2133 = vmatprep.subr.bf16.mxu0 0
      %2134 = vmatpush1.bf16.msra.mxu0 0
      %2135 = vmatprep.subr.bf16.mxu0 0
      %2136 = vmatpush1.bf16.msra.mxu0 0
      %2137 = vmatprep.mubr.bf16.mxu0 0
      %2138 = vmatmul.mubr.bf16.gmra.mrb[0].mxu0 %v1710
      %v2139 = vpop.f32.mrb[0].mxu0
      %v2140 = vadd.f32 %v1963, %v2139
      %v2141 = vpop.f32.mrb[0].mxu0
      %v2142 = vpop.f32.mrb[0].mxu0
      %v2143 = vadd.f32 %v1966, %v2142
      %v2144 = vpop.f32.mrb[0].mxu0
      %2145 = vmatprep.mubr.bf16.mxu0 0
      %2146 = vmatmul.mubr.bf16.gmra.mrb[0].mxu0 %v1711
      %v2147 = vpop.f32.mrb[0].mxu0
      %v2148 = vadd.f32 %v1971, %v2147
      %v2149 = vpop.f32.mrb[0].mxu0
      %v2150 = vpop.f32.mrb[0].mxu0
      %v2151 = vadd.f32 %v1974, %v2150
      %v2152 = vpop.f32.mrb[0].mxu0
      %2153 = vmatprep.mubr.bf16.mxu0 0
      %2154 = vmatmul.mubr.bf16.gmra.mrb[0].mxu0 %v1712
      %v2155 = vpop.f32.mrb[0].mxu0
      %v2156 = vadd.f32 %v1979, %v2155
      %v2157 = vpop.f32.mrb[0].mxu0
      %v2158 = vpop.f32.mrb[0].mxu0
      %v2159 = vadd.f32 %v1982, %v2158
      %v2160 = vpop.f32.mrb[0].mxu0
      %2161 = vmatprep.mubr.bf16.mxu0 0
      %2162 = vmatmul.mubr.bf16.gmra.mrb[0].mxu0 %v1713
      %v2163 = vpop.f32.mrb[0].mxu0
      %v2164 = vadd.f32 %v1987, %v2163
      %v2165 = vpop.f32.mrb[0].mxu0
      %v2166 = vpop.f32.mrb[0].mxu0
      %v2167 = vadd.f32 %v1990, %v2166
      %v2168 = vpop.f32.mrb[0].mxu0
      %2169 = vmatprep.mubr.bf16.mxu0 0
      %2170 = vmatmul.mubr.bf16.gmra.mrb[0].mxu0 %v1714
      %v2171 = vpop.f32.mrb[0].mxu0
      %v2172 = vadd.f32 %v1995, %v2171
      %v2173 = vpop.f32.mrb[0].mxu0
      %v2174 = vpop.f32.mrb[0].mxu0
      %v2175 = vadd.f32 %v1998, %v2174
      %v2176 = vpop.f32.mrb[0].mxu0
      %2177 = vmatprep.mubr.bf16.mxu0 0
      %2178 = vmatmul.mubr.bf16.gmra.mrb[0].mxu0 %v1715
      %v2179 = vpop.f32.mrb[0].mxu0
      %v2180 = vadd.f32 %v2003, %v2179
      %v2181 = vpop.f32.mrb[0].mxu0
      %v2182 = vpop.f32.mrb[0].mxu0
      %v2183 = vadd.f32 %v2006, %v2182
      %v2184 = vpop.f32.mrb[0].mxu0
      %2185 = vmatprep.mubr.bf16.mxu0 0
      %2186 = vmatmul.mubr.bf16.gmra.mrb[0].mxu0 %v1716
      %v2187 = vpop.f32.mrb[0].mxu0
      %v2188 = vadd.f32 %v2011, %v2187
      %v2189 = vpop.f32.mrb[0].mxu0
      %v2190 = vpop.f32.mrb[0].mxu0
      %v2191 = vadd.f32 %v2014, %v2190
      %v2192 = vpop.f32.mrb[0].mxu0
      %2193 = vmatprep.mubr.bf16.mxu0 0
      %2194 = vmatmul.mubr.bf16.gmra.mrb[0].mxu0 %v1717
      %v2195 = vpop.f32.mrb[0].mxu0
      %v2196 = vadd.f32 %v2019, %v2195
      %v2197 = vpop.f32.mrb[0].mxu0
      %v2198 = vpop.f32.mrb[0].mxu0
      %v2199 = vadd.f32 %v2022, %v2198
      %v2200 = vpop.f32.mrb[0].mxu0
      %2201 = vmatprep.mubr.bf16.mxu0 0
      %2202 = vmatmul.mubr.bf16.gmra.mrb[0].mxu0 %v1718
      %v2203 = vpop.f32.mrb[0].mxu0
      %v2204 = vadd.f32 %v2027, %v2203
      %v2205 = vpop.f32.mrb[0].mxu0
      %v2206 = vpop.f32.mrb[0].mxu0
      %v2207 = vadd.f32 %v2030, %v2206
      %v2208 = vpop.f32.mrb[0].mxu0
      %2209 = vmatprep.mubr.bf16.mxu0 0
      %2210 = vmatmul.mubr.bf16.gmra.mrb[0].mxu0 %v1719
      %v2211 = vpop.f32.mrb[0].mxu0
      %v2212 = vadd.f32 %v2035, %v2211
      %v2213 = vpop.f32.mrb[0].mxu0
      %v2214 = vpop.f32.mrb[0].mxu0
      %v2215 = vadd.f32 %v2038, %v2214
      %v2216 = vpop.f32.mrb[0].mxu0
      %2217 = vmatprep.mubr.bf16.mxu0 0
      %2218 = vmatmul.mubr.bf16.gmra.mrb[0].mxu0 %v1720
      %v2219 = vpop.f32.mrb[0].mxu0
      %v2220 = vadd.f32 %v2043, %v2219
      %v2221 = vpop.f32.mrb[0].mxu0
      %v2222 = vpop.f32.mrb[0].mxu0
      %v2223 = vadd.f32 %v2046, %v2222
      %v2224 = vpop.f32.mrb[0].mxu0
      %2225 = vmatprep.mubr.bf16.mxu0 0
      %2226 = vmatmul.mubr.bf16.gmra.mrb[0].mxu0 %v1721
      %v2227 = vpop.f32.mrb[0].mxu0
      %v2228 = vadd.f32 %v2051, %v2227
      %v2229 = vpop.f32.mrb[0].mxu0
      %v2230 = vpop.f32.mrb[0].mxu0
      %v2231 = vadd.f32 %v2054, %v2230
      %v2232 = vpop.f32.mrb[0].mxu0
      %2233 = vdwg.mxu0
      %v2234 = vld [vmem:[%s7] sm:$0x1]
      %v2236 = vlaneseq
      %v2237 = vshrl.u32 %v2236, 7
      %v2238 = vsub.s32 0, %v2237
      %v2239 = vrot.slane %v2234, %v2238
      %v2241 = vadd.f32 %v2140, %v2239
      %v2242 = vadd.f32 %v2143, %v2239
      %v2243 = vadd.f32 %v2148, %v2239
      %v2244 = vadd.f32 %v2151, %v2239
      %v2245 = vadd.f32 %v2156, %v2239
      %v2246 = vadd.f32 %v2159, %v2239
      %v2247 = vadd.f32 %v2164, %v2239
      %v2248 = vadd.f32 %v2167, %v2239
      %v2249 = vadd.f32 %v2172, %v2239
      %v2250 = vadd.f32 %v2175, %v2239
      %v2251 = vadd.f32 %v2180, %v2239
      %v2252 = vadd.f32 %v2183, %v2239
      %v2253 = vadd.f32 %v2188, %v2239
      %v2254 = vadd.f32 %v2191, %v2239
      %v2255 = vadd.f32 %v2196, %v2239
      %v2256 = vadd.f32 %v2199, %v2239
      %v2257 = vadd.f32 %v2204, %v2239
      %v2258 = vadd.f32 %v2207, %v2239
      %v2259 = vadd.f32 %v2212, %v2239
      %v2260 = vadd.f32 %v2215, %v2239
      %v2261 = vadd.f32 %v2220, %v2239
      %v2262 = vadd.f32 %v2223, %v2239
      %v2263 = vadd.f32 %v2228, %v2239
      %v2264 = vadd.f32 %v2231, %v2239
      %v2265 = vmax.f32 %v2241, 0.0
      %v2266 = vmax.f32 %v2242, 0.0
      %v2267 = vmax.f32 %v2243, 0.0
      %v2268 = vmax.f32 %v2244, 0.0
      %v2269 = vmax.f32 %v2245, 0.0
      %v2270 = vmax.f32 %v2246, 0.0
      %v2271 = vmax.f32 %v2247, 0.0
      %v2272 = vmax.f32 %v2248, 0.0
      %v2273 = vmax.f32 %v2249, 0.0
      %v2274 = vmax.f32 %v2250, 0.0
      %v2275 = vmax.f32 %v2251, 0.0
      %v2276 = vmax.f32 %v2252, 0.0
      %v2277 = vmax.f32 %v2253, 0.0
      %v2278 = vmax.f32 %v2254, 0.0
      %v2279 = vmax.f32 %v2255, 0.0
      %v2280 = vmax.f32 %v2256, 0.0
      %v2281 = vmax.f32 %v2257, 0.0
      %v2282 = vmax.f32 %v2258, 0.0
      %v2283 = vmax.f32 %v2259, 0.0
      %v2284 = vmax.f32 %v2260, 0.0
      %v2285 = vmax.f32 %v2261, 0.0
      %v2286 = vmax.f32 %v2262, 0.0
      %v2287 = vmax.f32 %v2263, 0.0
      %v2288 = vmax.f32 %v2264, 0.0
      %v2289 = vpack.c.bf16 %v2266, %v2265
      %v2290 = vpack.c.bf16 %v2268, %v2267
      %v2291 = vpack.c.bf16 %v2270, %v2269
      %v2292 = vpack.c.bf16 %v2272, %v2271
      %v2293 = vpack.c.bf16 %v2274, %v2273
      %v2294 = vpack.c.bf16 %v2276, %v2275
      %v2295 = vpack.c.bf16 %v2278, %v2277
      %v2296 = vpack.c.bf16 %v2280, %v2279
      %v2297 = vpack.c.bf16 %v2282, %v2281
      %v2298 = vpack.c.bf16 %v2284, %v2283
      %v2299 = vpack.c.bf16 %v2286, %v2285
      %v2300 = vpack.c.bf16 %v2288, %v2287
      %v2301 = vld [vmem:[%s8] sm:$0xf]
      %v2302 = vld [vmem:[%s8 + $0x4] sm:$0xf]
      %v2303 = vld [vmem:[%s8 + $0x8] sm:$0xf]
      %v2304 = vld [vmem:[%s8 + $0xc] sm:$0xf]
      %v2305 = vld [vmem:[%s8 + $0x10] sm:$0xf]
      %v2306 = vld [vmem:[%s8 + $0x14] sm:$0xf]
      %v2307 = vld [vmem:[%s8 + $0x18] sm:$0xf]
      %v2308 = vld [vmem:[%s8 + $0x1c] sm:$0xf]
      %v2309 = vld [vmem:[%s8 + $0x20] sm:$0xf]
      %v2310 = vld [vmem:[%s8 + $0x24] sm:$0xf]
      %v2311 = vld [vmem:[%s8 + $0x28] sm:$0xf]
      %v2312 = vld [vmem:[%s8 + $0x2c] sm:$0xf]
      %v2313 = vld [vmem:[%s8 + $0x30] sm:$0xf]
      %v2314 = vld [vmem:[%s8 + $0x34] sm:$0xf]
      %v2315 = vld [vmem:[%s8 + $0x38] sm:$0xf]
      %v2316 = vld [vmem:[%s8 + $0x3c] sm:$0xf]
      %v2317 = vld [vmem:[%s9] sm:$0x1]
      %v2319 = vlaneseq
      %v2320 = vshrl.u32 %v2319, 7
      %v2321 = vsub.s32 0, %v2320
      %v2322 = vrot.slane %v2317, %v2321
      %v2340 = vunpack.c.l.b16 %v2301
      %v2341 = vunpack.c.l.b16 %v2302
      %v2342 = vunpack.c.l.b16 %v2303
      %v2343 = vunpack.c.l.b16 %v2304
      %v2344 = vunpack.c.l.b16 %v2305
      %v2345 = vunpack.c.l.b16 %v2306
      %v2346 = vunpack.c.l.b16 %v2307
      %v2347 = vunpack.c.l.b16 %v2308
      %v2348 = vunpack.c.l.b16 %v2309
      %v2349 = vunpack.c.l.b16 %v2310
      %v2350 = vunpack.c.l.b16 %v2311
      %v2351 = vunpack.c.l.b16 %v2312
      %v2352 = vunpack.c.l.b16 %v2313
      %v2353 = vunpack.c.l.b16 %v2314
      %v2354 = vunpack.c.l.b16 %v2315
      %v2355 = vunpack.c.l.b16 %v2316
      %v2356 = vpack.c.b16 %v2341, %v2340
      %v2357 = vpack.c.b16 %v2343, %v2342
      %v2358 = vpack.c.b16 %v2345, %v2344
      %v2359 = vpack.c.b16 %v2347, %v2346
      %v2360 = vpack.c.b16 %v2349, %v2348
      %v2361 = vpack.c.b16 %v2351, %v2350
      %v2362 = vpack.c.b16 %v2353, %v2352
      %v2363 = vpack.c.b16 %v2355, %v2354
      %2372 = vmatprep.subr.bf16.mxu0 0
      %2373 = vmatpush1.bf16.msra.mxu0 %v2356
      %2374 = vmatprep.subr.bf16.mxu0 0
      %2375 = vmatpush1.bf16.msra.mxu0 %v2357
      %2376 = vmatprep.subr.bf16.mxu0 0
      %2377 = vmatpush1.bf16.msra.mxu0 %v2358
      %2378 = vmatprep.subr.bf16.mxu0 0
      %2379 = vmatpush1.bf16.msra.mxu0 %v2359
      %2380 = vmatprep.subr.bf16.mxu0 0
      %2381 = vmatpush1.bf16.msra.mxu0 %v2360
      %2382 = vmatprep.subr.bf16.mxu0 0
      %2383 = vmatpush1.bf16.msra.mxu0 %v2361
      %2384 = vmatprep.subr.bf16.mxu0 0
      %2385 = vmatpush1.bf16.msra.mxu0 %v2362
      %2386 = vmatprep.subr.bf16.mxu0 0
      %2387 = vmatpush1.bf16.msra.mxu0 %v2363
      %2388 = vmatprep.subr.bf16.mxu0 0
      %2389 = vmatpush1.bf16.msra.mxu0 0
      %2390 = vmatprep.subr.bf16.mxu0 0
      %2391 = vmatpush1.bf16.msra.mxu0 0
      %2392 = vmatprep.subr.bf16.mxu0 0
      %2393 = vmatpush1.bf16.msra.mxu0 0
      %2394 = vmatprep.subr.bf16.mxu0 0
      %2395 = vmatpush1.bf16.msra.mxu0 0
      %2396 = vmatprep.subr.bf16.mxu0 0
      %2397 = vmatpush1.bf16.msra.mxu0 0
      %2398 = vmatprep.subr.bf16.mxu0 0
      %2399 = vmatpush1.bf16.msra.mxu0 0
      %2400 = vmatprep.subr.bf16.mxu0 0
      %2401 = vmatpush1.bf16.msra.mxu0 0
      %2402 = vmatprep.subr.bf16.mxu0 0
      %2403 = vmatpush1.bf16.msra.mxu0 0
      %2404 = vmatprep.mubr.bf16.mxu0 0
      %2405 = vmatmul.mubr.bf16.gmra.mrb[0].mxu0 %v2289
      %v2406 = vpop.f32.mrb[0].mxu0
      %v2407 = vadd.f32 %v2322, %v2406
      %v2408 = vpop.f32.mrb[0].mxu0
      %v2409 = vpop.f32.mrb[0].mxu0
      %v2410 = vadd.f32 %v2322, %v2409
      %v2411 = vpop.f32.mrb[0].mxu0
      %2412 = vmatprep.mubr.bf16.mxu0 0
      %2413 = vmatmul.mubr.bf16.gmra.mrb[0].mxu0 %v2290
      %v2414 = vpop.f32.mrb[0].mxu0
      %v2415 = vadd.f32 %v2322, %v2414
      %v2416 = vpop.f32.mrb[0].mxu0
      %v2417 = vpop.f32.mrb[0].mxu0
      %v2418 = vadd.f32 %v2322, %v2417
      %v2419 = vpop.f32.mrb[0].mxu0
      %2420 = vmatprep.mubr.bf16.mxu0 0
      %2421 = vmatmul.mubr.bf16.gmra.mrb[0].mxu0 %v2291
      %v2422 = vpop.f32.mrb[0].mxu0
      %v2423 = vadd.f32 %v2322, %v2422
      %v2424 = vpop.f32.mrb[0].mxu0
      %v2425 = vpop.f32.mrb[0].mxu0
      %v2426 = vadd.f32 %v2322, %v2425
      %v2427 = vpop.f32.mrb[0].mxu0
      %2428 = vmatprep.mubr.bf16.mxu0 0
      %2429 = vmatmul.mubr.bf16.gmra.mrb[0].mxu0 %v2292
      %v2430 = vpop.f32.mrb[0].mxu0
      %v2431 = vadd.f32 %v2322, %v2430
      %v2432 = vpop.f32.mrb[0].mxu0
      %v2433 = vpop.f32.mrb[0].mxu0
      %v2434 = vadd.f32 %v2322, %v2433
      %v2435 = vpop.f32.mrb[0].mxu0
      %2436 = vmatprep.mubr.bf16.mxu0 0
      %2437 = vmatmul.mubr.bf16.gmra.mrb[0].mxu0 %v2293
      %v2438 = vpop.f32.mrb[0].mxu0
      %v2439 = vadd.f32 %v2322, %v2438
      %v2440 = vpop.f32.mrb[0].mxu0
      %v2441 = vpop.f32.mrb[0].mxu0
      %v2442 = vadd.f32 %v2322, %v2441
      %v2443 = vpop.f32.mrb[0].mxu0
      %2444 = vmatprep.mubr.bf16.mxu0 0
      %2445 = vmatmul.mubr.bf16.gmra.mrb[0].mxu0 %v2294
      %v2446 = vpop.f32.mrb[0].mxu0
      %v2447 = vadd.f32 %v2322, %v2446
      %v2448 = vpop.f32.mrb[0].mxu0
      %v2449 = vpop.f32.mrb[0].mxu0
      %v2450 = vadd.f32 %v2322, %v2449
      %v2451 = vpop.f32.mrb[0].mxu0
      %2452 = vmatprep.mubr.bf16.mxu0 0
      %2453 = vmatmul.mubr.bf16.gmra.mrb[0].mxu0 %v2295
      %v2454 = vpop.f32.mrb[0].mxu0
      %v2455 = vadd.f32 %v2322, %v2454
      %v2456 = vpop.f32.mrb[0].mxu0
      %v2457 = vpop.f32.mrb[0].mxu0
      %v2458 = vadd.f32 %v2322, %v2457
      %v2459 = vpop.f32.mrb[0].mxu0
      %2460 = vmatprep.mubr.bf16.mxu0 0
      %2461 = vmatmul.mubr.bf16.gmra.mrb[0].mxu0 %v2296
      %v2462 = vpop.f32.mrb[0].mxu0
      %v2463 = vadd.f32 %v2322, %v2462
      %v2464 = vpop.f32.mrb[0].mxu0
      %v2465 = vpop.f32.mrb[0].mxu0
      %v2466 = vadd.f32 %v2322, %v2465
      %v2467 = vpop.f32.mrb[0].mxu0
      %2468 = vmatprep.mubr.bf16.mxu0 0
      %2469 = vmatmul.mubr.bf16.gmra.mrb[0].mxu0 %v2297
      %v2470 = vpop.f32.mrb[0].mxu0
      %v2471 = vadd.f32 %v2322, %v2470
      %v2472 = vpop.f32.mrb[0].mxu0
      %v2473 = vpop.f32.mrb[0].mxu0
      %v2474 = vadd.f32 %v2322, %v2473
      %v2475 = vpop.f32.mrb[0].mxu0
      %2476 = vmatprep.mubr.bf16.mxu0 0
      %2477 = vmatmul.mubr.bf16.gmra.mrb[0].mxu0 %v2298
      %v2478 = vpop.f32.mrb[0].mxu0
      %v2479 = vadd.f32 %v2322, %v2478
      %v2480 = vpop.f32.mrb[0].mxu0
      %v2481 = vpop.f32.mrb[0].mxu0
      %v2482 = vadd.f32 %v2322, %v2481
      %v2483 = vpop.f32.mrb[0].mxu0
      %2484 = vmatprep.mubr.bf16.mxu0 0
      %2485 = vmatmul.mubr.bf16.gmra.mrb[0].mxu0 %v2299
      %v2486 = vpop.f32.mrb[0].mxu0
      %v2487 = vadd.f32 %v2322, %v2486
      %v2488 = vpop.f32.mrb[0].mxu0
      %v2489 = vpop.f32.mrb[0].mxu0
      %v2490 = vadd.f32 %v2322, %v2489
      %v2491 = vpop.f32.mrb[0].mxu0
      %2492 = vmatprep.mubr.bf16.mxu0 0
      %2493 = vmatmul.mubr.bf16.gmra.mrb[0].mxu0 %v2300
      %v2494 = vpop.f32.mrb[0].mxu0
      %v2495 = vadd.f32 %v2322, %v2494
      %v2496 = vpop.f32.mrb[0].mxu0
      %v2497 = vpop.f32.mrb[0].mxu0
      %v2498 = vadd.f32 %v2322, %v2497
      %v2499 = vpop.f32.mrb[0].mxu0
      %2500 = vdwg.mxu0
      %v2501 = vmax.f32 %v2407, 0.0
      %v2502 = vmax.f32 %v2410, 0.0
      %v2503 = vmax.f32 %v2415, 0.0
      %v2504 = vmax.f32 %v2418, 0.0
      %v2505 = vmax.f32 %v2423, 0.0
      %v2506 = vmax.f32 %v2426, 0.0
      %v2507 = vmax.f32 %v2431, 0.0
      %v2508 = vmax.f32 %v2434, 0.0
      %v2509 = vmax.f32 %v2439, 0.0
      %v2510 = vmax.f32 %v2442, 0.0
      %v2511 = vmax.f32 %v2447, 0.0
      %v2512 = vmax.f32 %v2450, 0.0
      %v2513 = vmax.f32 %v2455, 0.0
      %v2514 = vmax.f32 %v2458, 0.0
      %v2515 = vmax.f32 %v2463, 0.0
      %v2516 = vmax.f32 %v2466, 0.0
      %v2517 = vmax.f32 %v2471, 0.0
      %v2518 = vmax.f32 %v2474, 0.0
      %v2519 = vmax.f32 %v2479, 0.0
      %v2520 = vmax.f32 %v2482, 0.0
      %v2521 = vmax.f32 %v2487, 0.0
      %v2522 = vmax.f32 %v2490, 0.0
      %v2523 = vmax.f32 %v2495, 0.0
      %v2524 = vmax.f32 %v2498, 0.0
      %v2550 = vrot.slane %v524, 1
      %v2551 = vrot.slane %v525, 1
      %v2552 = vsel %vm665, %v2550, %v2551
      %v2553 = vrot.slane %v526, 1
      %v2554 = vsel %vm665, %v2551, %v2553
      %v2555 = vrot.slane %v527, 1
      %v2556 = vsel %vm665, %v2553, %v2555
      %v2557 = vrot.slane %v528, 1
      %v2558 = vsel %vm665, %v2555, %v2557
      %v2559 = vrot.slane %v529, 1
      %v2560 = vsel %vm665, %v2557, %v2559
      %v2561 = vrot.slane %v530, 1
      %v2562 = vsel %vm665, %v2559, %v2561
      %v2563 = vrot.slane %v531, 1
      %v2564 = vsel %vm665, %v2561, %v2563
      %v2565 = vrot.slane %v532, 1
      %v2566 = vsel %vm665, %v2563, %v2565
      %v2567 = vrot.slane %v533, 1
      %v2568 = vsel %vm665, %v2565, %v2567
      %v2569 = vrot.slane %v534, 1
      %v2570 = vsel %vm665, %v2567, %v2569
      %v2571 = vrot.slane %v535, 1
      %v2572 = vsel %vm665, %v2569, %v2571
      %v2573 = vrot.slane %v536, 1
      %v2574 = vsel %vm665, %v2571, %v2573
      %v2575 = vrot.slane %v537, 1
      %v2576 = vsel %vm665, %v2573, %v2575
      %v2577 = vrot.slane %v538, 1
      %v2578 = vsel %vm665, %v2575, %v2577
      %v2579 = vrot.slane %v539, 1
      %v2580 = vsel %vm665, %v2577, %v2579
      %v2581 = vrot.slane %v540, 1
      %v2582 = vsel %vm665, %v2579, %v2581
      %v2583 = vrot.slane %v541, 1
      %v2584 = vsel %vm665, %v2581, %v2583
      %v2585 = vrot.slane %v542, 1
      %v2586 = vsel %vm665, %v2583, %v2585
      %v2587 = vrot.slane %v543, 1
      %v2588 = vsel %vm665, %v2585, %v2587
      %v2589 = vrot.slane %v544, 1
      %v2590 = vsel %vm665, %v2587, %v2589
      %v2591 = vrot.slane %v551, 1
      %v2592 = vsel %vm665, %v2589, %v2591
      %v2593 = vrot.slane %v552, 1
      %v2594 = vsel %vm665, %v2591, %v2593
      %v2595 = vrot.slane %v553, 1
      %v2596 = vsel %vm665, %v2593, %v2595
      %v2597 = vrot.slane %v554, 1
      %v2598 = vsel %vm665, %v2595, %v2597
      %v2623 = vadd.f32 %v2501, %v2552
      %v2624 = vadd.f32 %v2502, %v2554
      %v2625 = vadd.f32 %v2503, %v2556
      %v2626 = vadd.f32 %v2504, %v2558
      %v2627 = vadd.f32 %v2505, %v2560
      %v2628 = vadd.f32 %v2506, %v2562
      %v2629 = vadd.f32 %v2507, %v2564
      %v2630 = vadd.f32 %v2508, %v2566
      %v2631 = vadd.f32 %v2509, %v2568
      %v2632 = vadd.f32 %v2510, %v2570
      %v2633 = vadd.f32 %v2511, %v2572
      %v2634 = vadd.f32 %v2512, %v2574
      %v2635 = vadd.f32 %v2513, %v2576
      %v2636 = vadd.f32 %v2514, %v2578
      %v2637 = vadd.f32 %v2515, %v2580
      %v2638 = vadd.f32 %v2516, %v2582
      %v2639 = vadd.f32 %v2517, %v2584
      %v2640 = vadd.f32 %v2518, %v2586
      %v2641 = vadd.f32 %v2519, %v2588
      %v2642 = vadd.f32 %v2520, %v2590
      %v2643 = vadd.f32 %v2521, %v2592
      %v2644 = vadd.f32 %v2522, %v2594
      %v2645 = vadd.f32 %v2523, %v2596
      %v2646 = vadd.f32 %v2524, %v2598
      %v2647 = vpack.c.bf16 %v2624, %v2623
      %v2648 = vpack.c.bf16 %v2625, %v2625
      %v2649 = vpack.c.bf16 %v2627, %v2626
      %v2650 = vpack.c.bf16 %v2628, %v2628
      %v2651 = vpack.c.bf16 %v2630, %v2629
      %v2652 = vpack.c.bf16 %v2631, %v2631
      %v2653 = vpack.c.bf16 %v2633, %v2632
      %v2654 = vpack.c.bf16 %v2634, %v2634
      %v2655 = vpack.c.bf16 %v2636, %v2635
      %v2656 = vpack.c.bf16 %v2637, %v2637
      %v2657 = vpack.c.bf16 %v2639, %v2638
      %v2658 = vpack.c.bf16 %v2640, %v2640
      %v2659 = vpack.c.bf16 %v2642, %v2641
      %v2660 = vpack.c.bf16 %v2643, %v2643
      %v2661 = vpack.c.bf16 %v2645, %v2644
      %v2662 = vpack.c.bf16 %v2646, %v2646
      %v2679 = vunpack.c.l.b16 %v2647
      %v2680 = vunpack.c.h.b16 %v2647
      %v2681 = vunpack.c.l.b16 %v2648
      %v2682 = vunpack.c.l.b16 %v2649
      %v2683 = vunpack.c.h.b16 %v2649
      %v2684 = vunpack.c.l.b16 %v2650
      %v2685 = vunpack.c.l.b16 %v2651
      %v2686 = vunpack.c.h.b16 %v2651
      %v2687 = vunpack.c.l.b16 %v2652
      %v2688 = vunpack.c.l.b16 %v2653
      %v2689 = vunpack.c.h.b16 %v2653
      %v2690 = vunpack.c.l.b16 %v2654
      %v2691 = vunpack.c.l.b16 %v2655
      %v2692 = vunpack.c.h.b16 %v2655
      %v2693 = vunpack.c.l.b16 %v2656
      %v2694 = vunpack.c.l.b16 %v2657
      %v2695 = vunpack.c.h.b16 %v2657
      %v2696 = vunpack.c.l.b16 %v2658
      %v2697 = vunpack.c.l.b16 %v2659
      %v2698 = vunpack.c.h.b16 %v2659
      %v2699 = vunpack.c.l.b16 %v2660
      %v2700 = vunpack.c.l.b16 %v2661
      %v2701 = vunpack.c.h.b16 %v2661
      %v2702 = vunpack.c.l.b16 %v2662
      %v2703 = vpack.c.b16 %v2679, %v2679
      %v2704 = vpack.c.b16 %v2680, %v2680
      %v2705 = vpack.c.b16 %v2681, %v2681
      %v2706 = vpack.c.b16 %v2682, %v2682
      %v2707 = vpack.c.b16 %v2683, %v2683
      %v2708 = vpack.c.b16 %v2684, %v2684
      %v2709 = vpack.c.b16 %v2685, %v2685
      %v2710 = vpack.c.b16 %v2686, %v2686
      %v2711 = vpack.c.b16 %v2687, %v2687
      %v2712 = vpack.c.b16 %v2688, %v2688
      %v2713 = vpack.c.b16 %v2689, %v2689
      %v2714 = vpack.c.b16 %v2690, %v2690
      %v2715 = vpack.c.b16 %v2691, %v2691
      %v2716 = vpack.c.b16 %v2692, %v2692
      %v2717 = vpack.c.b16 %v2693, %v2693
      %v2718 = vpack.c.b16 %v2694, %v2694
      %v2719 = vpack.c.b16 %v2695, %v2695
      %v2720 = vpack.c.b16 %v2696, %v2696
      %v2721 = vpack.c.b16 %v2697, %v2697
      %v2722 = vpack.c.b16 %v2698, %v2698
      %v2723 = vpack.c.b16 %v2699, %v2699
      %v2724 = vpack.c.b16 %v2700, %v2700
      %v2725 = vpack.c.b16 %v2701, %v2701
      %v2726 = vpack.c.b16 %v2702, %v2702
      %2751 = vst [vmem:[%s494] sm:$0xf] %v2703
      %2752 = vst [vmem:[%s494 + $0x4] sm:$0xf] %v2704
      %2753 = vst [vmem:[%s494 + $0x8] sm:$0xf] %v2705
      %2754 = vst [vmem:[%s494 + $0xc] sm:$0xf] %v2706
      %2755 = vst [vmem:[%s494 + $0x10] sm:$0xf] %v2707
      %2756 = vst [vmem:[%s494 + $0x14] sm:$0xf] %v2708
      %2757 = vst [vmem:[%s494 + $0x18] sm:$0xf] %v2709
      %2758 = vst [vmem:[%s494 + $0x1c] sm:$0xf] %v2710
      %2759 = vst [vmem:[%s494 + $0x20] sm:$0xf] %v2711
      %2760 = vst [vmem:[%s494 + $0x24] sm:$0xf] %v2712
      %2761 = vst [vmem:[%s494 + $0x28] sm:$0xf] %v2713
      %2762 = vst [vmem:[%s494 + $0x2c] sm:$0xf] %v2714
      %2763 = vst [vmem:[%s494 + $0x30] sm:$0xf] %v2715
      %2764 = vst [vmem:[%s494 + $0x34] sm:$0xf] %v2716
      %2765 = vst [vmem:[%s494 + $0x38] sm:$0xf] %v2717
      %2766 = vst [vmem:[%s494 + $0x3c] sm:$0xf] %v2718
      %2767 = vst [vmem:[%s494 + $0x40] sm:$0xf] %v2719
      %2768 = vst [vmem:[%s494 + $0x44] sm:$0xf] %v2720
      %2769 = vst [vmem:[%s494 + $0x48] sm:$0xf] %v2721
      %2770 = vst [vmem:[%s494 + $0x4c] sm:$0xf] %v2722
      %2771 = vst [vmem:[%s494 + $0x50] sm:$0xf] %v2723
      %2772 = vst [vmem:[%s494 + $0x54] sm:$0xf] %v2724
      %2773 = vst [vmem:[%s494 + $0x58] sm:$0xf] %v2725
      %2774 = vst [vmem:[%s494 + $0x5c] sm:$0xf] %v2726
      %s2775 = smul.u32 8, %s26
      %p2776 = scmp.lt.s32.totalorder %s25, 1
      %s2777 = scalar_select %p2776, %s25, 1
      %p2778 = scmp.lt.s32.totalorder %s2775, 15
      %s2779 = scalar_select %p2778, %s2775, 15
      %s2780 = smul.addr %s2779, 3
      %s2781 = smul.addr %s2777, 48
      %s2782 = sadd.s32 %s2780, %s2781
      %s2783 = smul.addr %s2782, 4
      %s2784 = scalar_lea.vmem %s10, %s2783
      // Predicated region
      $region61: #{dyhead_forward.1} parent=59 // pred_check
        %p2785 = pneg %p286
      $region62: #{dyhead_forward.1} parent=59 // pred_check_branch
        %2787 = sbr.rel (%p2785) target = $region64
      $region63: #{dyhead_forward.1} parent=59 // pred_region
        %s2788 = smul.u32 8, %s26
      $region64: #{dyhead_forward.1} parent=59 // pred_fallthru
        _
    $region60: #{dyhead_forward.1} parent=5 // pred_fallthru
      _
    %p2789 = scmp.le.s32.totalorder 2, %s16
    // Predicated region
    $region65: #{dyhead_forward.1} parent=5 // pred_check
      %p2790 = pneg %p2789
    $region66: #{dyhead_forward.1} parent=5 // pred_check_branch
      %2792 = sbr.rel (%p2790) target = $region68
    $region67: #{dyhead_forward.1} parent=5 // pred_region
      %s2793 = ssub.s32 %s16, 2
      // Predicated region
      $region69: #{dyhead_forward.1} parent=67 // pred_check
        %p2794 = pneg %p292
      $region70: #{dyhead_forward.1} parent=67 // pred_check_branch
        %2796 = sbr.rel (%p2794) target = $region72
      $region71: #{dyhead_forward.1} parent=67 // pred_region
        %s2797 = smul.u32 8, %s28
        %p2798 = scmp.lt.s32.totalorder %s27, 1
        %s2799 = scalar_select %p2798, %s27, 1
        %p2800 = scmp.lt.s32.totalorder %s2797, 15
        %s2801 = scalar_select %p2800, %s2797, 15
        %s2802 = smul.addr %s2801, 3
        %s2803 = smul.addr %s2799, 48
        %s2804 = sadd.s32 %s2802, %s2803
        %s2805 = smul.addr %s2804, 4
        %s2806 = scalar_lea.vmem %s10, %s2805
      $region72: #{dyhead_forward.1} parent=67 // pred_fallthru
        _
    $region68: #{dyhead_forward.1} parent=5 // pred_fallthru
      _
  $region6: #{dyhead_forward.1} parent=0 // loop_footer
    %s20 = sadd.s32 1, %s16
  $region7: #{dyhead_forward.1} parent=0 // loop_footer_branch
    %15 = sbr.rel target = $region3
  $region8: #{dyhead_forward.1} parent=0 // loop_exit
    _

</llo_original>
